<compile_context>
chip_gen: v7x
topology: tpu7x:2x2x1
jax: 0.10.0
libtpu: 0.0.40
codegen_flags: <defaults>
</compile_context>

<pallas_src>
import functools

import jax
import jax.numpy as jnp
from jax.experimental import pallas as pl
from jax.experimental.pallas import tpu as pltpu


def _round_up(x, m):
    return ((x + m - 1) // m) * m


def _cdiv(a, b):
    return -(-a // b)


# -----------------------------------------------------------------------------
# Pallas kernel: fused MLP + rgb/sigma head, plane-concat folded into layer 1
# -----------------------------------------------------------------------------
def _decoder_kernel(x_ref,            # (n_planes, tm, C)        input block
                    w1_ref, b1_ref,   # (3C, H) cdt, (1, H) f32
                    wh_ref, bh_ref,   # (L-2, H, H) cdt, (L-2, 1, H) f32
                    wo_ref, bo_ref,   # (H, 4) cdt, (1, 4) f32
                    out_ref,          # (tm, 4) f32               output block
                    cat_ref,          # (tm, 3C) cdt              VMEM scratch
                    *, n_planes, n_hidden, compute_dtype):
    C = x_ref.shape[-1]

    # ---- Layer 1: lane-pack the plane concat so the whole layer is ONE MXU
    # contraction with K = n_planes*C instead of n_planes small K=C dots
    # (vmatmul pushes scale with LHS rows per dot, so this is ~3x fewer pushes
    # on the saturating extended slot).  The cast to the MXU dtype happens
    # here (VPU), so f32 HBM inputs never need a wrapper-side conversion pass.
    for p in range(n_planes):
        cat_ref[:, p * C:(p + 1) * C] = x_ref[p].astype(compute_dtype)
    h = jnp.dot(cat_ref[...], w1_ref[...], preferred_element_type=jnp.float32)
    h = jnp.maximum(h + b1_ref[...], 0.0)           # bias/ReLU kept in f32

    # ---- Hidden layers (statically unrolled over the stacked weight tensor).
    for l in range(n_hidden):
        h = jnp.dot(h.astype(compute_dtype), wh_ref[l],
                    preferred_element_type=jnp.float32)
        h = jnp.maximum(h + bh_ref[l], 0.0)

    # ---- Output head: Linear(H -> 1 + 3), no activation.
    out = jnp.dot(h.astype(compute_dtype), wo_ref[...],
                  preferred_element_type=jnp.float32) + bo_ref[...]

    # Merged (tm, 4) slab: lane 0 = raw sigma, lanes 1..3 = rgb transform.
    lane = jax.lax.broadcasted_iota(jnp.int32, out.shape, dimension=1)
    rgb = jax.nn.sigmoid(out) * (1.0 + 2.0 * 0.001) - 0.001
    out_ref[...] = jnp.where(lane == 0, out, rgb).astype(out_ref.dtype)


# -----------------------------------------------------------------------------
# Tiling helpers
# -----------------------------------------------------------------------------
def _choose_row_tile(M, N, cap):
    """Row-tile size: always a multiple of 8 (sublane-aligned), as large as the
    cap allows, and small enough that the grid has >= 2 steps when N == 1 so
    dual-TensorCore chips (v7x megacore) get work on both cores."""
    cap = max(8, (int(cap) // 8) * 8)
    if N == 1 and M > 8:
        cap = min(cap, _round_up(_cdiv(M, 2), 8))
    return min(cap, _round_up(M, 8))


# -----------------------------------------------------------------------------
# Wrapper
# -----------------------------------------------------------------------------
@functools.partial(jax.jit,
                   static_argnames=("tile_rows", "use_bf16", "vmem_limit_bytes"))
def lrm_osg_decoder_forward(sampled_features, ray_directions, params,
                            tile_rows=2048, use_bf16=True,
                            vmem_limit_bytes=None):
    """sampled_features: (N, n_planes, M, C), f32 or bf16 (bf16 HBM input is
    consumed directly).  ray_directions is unused by the reference forward."""
    del ray_directions  # not used by the PyTorch forward pass
    N, n_planes, M, C = sampled_features.shape

    hidden = params["w1"].shape[1]
    out_dim = params["wo"].shape[1]          # 1 + 3
    n_hidden = params["wh"].shape[0]         # num_layers - 2
    assert params["w1"].shape[0] == n_planes * C
    assert n_hidden >= 1, "kernel expects num_layers >= 3"

    cdt = jnp.bfloat16 if use_bf16 else jnp.float32
    # Pre-cast MXU operands once here (not per grid step inside the kernel);
    # biases (and all post-matmul elementwise work) stay f32.
    w1 = params["w1"].astype(cdt)
    wh = params["wh"].astype(cdt)
    wo = params["wo"].astype(cdt)
    b1 = params["b1"].astype(jnp.float32)
    bh = params["bh"].astype(jnp.float32)
    bo = params["bo"].astype(jnp.float32)

    tm = _choose_row_tile(M, N, tile_rows)
    grid_m = _cdiv(M, tm)
    m_pad = grid_m * tm
    x = sampled_features
    if m_pad != M:   # pad rows so the 8-aligned tm always divides exactly
        x = jnp.pad(x, ((0, 0), (0, 0), (0, m_pad - M), (0, 0)))

    if vmem_limit_bytes is None:
        # Lane-padded (last dim -> 128) per-step footprint + headroom.
        x_b = jnp.dtype(x.dtype).itemsize
        c_b = jnp.dtype(cdt).itemsize
        per_step = (2 * n_planes * tm * 128 * x_b   # input block, double buffered
                    + 2 * tm * 128 * 4              # output block, double buffered
                    + tm * 128 * c_b                # concat scratch
                    + 4 * tm * 128 * 4)             # activation temporaries
        vmem_limit_bytes = int(min(max(32 << 20, per_step * 5 // 4 + (4 << 20)),
                                   120 << 20))

    kernel = functools.partial(_decoder_kernel, n_planes=n_planes,
                               n_hidden=n_hidden, compute_dtype=cdt)

    def const_spec(shape):
        zeros = (0,) * len(shape)
        return pl.BlockSpec(shape, lambda n, m: zeros)

    out = pl.pallas_call(
        kernel,
        out_shape=jax.ShapeDtypeStruct((N, m_pad, out_dim), jnp.float32),
        grid_spec=pltpu.PrefetchScalarGridSpec(
            num_scalar_prefetch=0,
            grid=(N, grid_m),
            in_specs=[
                # activations: (N, P, M, C) -> block (P, tm, C), batch squeezed
                pl.BlockSpec((pl.Squeezed(), n_planes, tm, C),
                             lambda n, m: (n, 0, m, 0)),
                const_spec((n_planes * C, hidden)),        # W1 (plane-major rows)
                const_spec((1, hidden)),                   # b1
                const_spec((n_hidden, hidden, hidden)),    # hidden Ws (stacked)
                const_spec((n_hidden, 1, hidden)),         # hidden bs (stacked)
                const_spec((hidden, out_dim)),             # W_out
                const_spec((1, out_dim)),                  # b_out
            ],
            out_specs=pl.BlockSpec((pl.Squeezed(), tm, out_dim),
                                   lambda n, m: (n, m, 0)),
            scratch_shapes=[pltpu.VMEM((tm, n_planes * C), cdt)],
        ),
        compiler_params=pltpu.CompilerParams(
            dimension_semantics=("parallel", "parallel"),
            vmem_limit_bytes=vmem_limit_bytes),
    )(x, w1, b1, wh, bh, wo, bo)

    if m_pad != M:
        out = out[:, :M]
    # Cheap split of the tiny merged slab into the reference dict layout.
    return {"rgb": out[..., 1:out_dim], "sigma": out[..., 0:1]}


# -----------------------------------------------------------------------------
# Deterministic parameter init (matches module shapes; biases zero as in ref)
# -----------------------------------------------------------------------------
def init_params(key, n_features, hidden_dim=64, num_layers=4, out_dim=4):
    assert num_layers >= 3, "kernel expects at least one hidden layer"
    in_dim = 3 * n_features
    n_hidden = num_layers - 2
    keys = jax.random.split(key, num_layers)

    def uniform_init(k, fan_in, fan_out):
        bound = 1.0 / jnp.sqrt(fan_in)
        return jax.random.uniform(k, (fan_in, fan_out), jnp.float32,
                                  minval=-bound, maxval=bound)

    wh = jnp.stack([uniform_init(keys[1 + i], hidden_dim, hidden_dim)
                    for i in range(n_hidden)])
    return {
        "w1": uniform_init(keys[0], in_dim, hidden_dim),
        "b1": jnp.zeros((1, hidden_dim), jnp.float32),
        "wh": wh,
        "bh": jnp.zeros((n_hidden, 1, hidden_dim), jnp.float32),
        "wo": uniform_init(keys[-1], hidden_dim, out_dim),
        "bo": jnp.zeros((1, out_dim), jnp.float32),
    }


# -----------------------------------------------------------------------------
# Pure-JAX reference for correctness check
# -----------------------------------------------------------------------------
def reference_forward(sampled_features, params):
    N, P, M, C = sampled_features.shape
    x = jnp.transpose(sampled_features.astype(jnp.float32),
                      (0, 2, 1, 3)).reshape(N * M, P * C)
    h = jax.nn.relu(x @ params["w1"] + params["b1"])
    for l in range(params["wh"].shape[0]):
        h = jax.nn.relu(h @ params["wh"][l] + params["bh"][l])
    out = h @ params["wo"] + params["bo"]
    rgb = jax.nn.sigmoid(out[:, 1:]) * (1 + 2 * 0.001) - 0.001
    sigma = out[:, 0:1]
    return {"rgb": rgb.reshape(N, M, -1), "sigma": sigma.reshape(N, M, 1)}


if __name__ == "__main__":
    key = jax.random.PRNGKey(0)
    k_feat, k_dir, k_param = jax.random.split(key, 3)

    # Small shapes consistent with the module: N=2 batches, 3 triplanes,
    # M=256 sampled points, C=32 features per plane, hidden=64, num_layers=4.
    N, n_planes, M, C = 2, 3, 256, 32
    hidden_dim = 64

    sampled_features = jax.random.normal(k_feat, (N, n_planes, M, C), jnp.float32)
    ray_directions = jax.random.normal(k_dir, (N, M, 3), jnp.float32)
    params = init_params(k_param, n_features=C, hidden_dim=hidden_dim)

    ref = reference_forward(sampled_features, params)

    # 1) f32 MXU path: tight check that the kernel math matches the reference.
    out_f32 = lrm_osg_decoder_forward(sampled_features, ray_directions, params,
                                      use_bf16=False)
    out_f32 = jax.tree_util.tree_map(jax.block_until_ready, out_f32)
    assert out_f32["rgb"].shape == (N, M, 3)
    assert out_f32["sigma"].shape == (N, M, 1)
    assert jnp.allclose(out_f32["rgb"], ref["rgb"], atol=1e-5, rtol=1e-5)
    assert jnp.allclose(out_f32["sigma"], ref["sigma"], atol=1e-5, rtol=1e-5)

    # 2) Production default: bf16 MXU operands with f32 accumulation
    #    (looser tolerance, expected from the bf16 rounding).
    out_bf16 = lrm_osg_decoder_forward(sampled_features, ray_directions, params)
    out_bf16 = jax.tree_util.tree_map(jax.block_until_ready, out_bf16)
    assert jnp.allclose(out_bf16["rgb"], ref["rgb"], atol=5e-2, rtol=0)
    assert jnp.allclose(out_bf16["sigma"], ref["sigma"], atol=5e-2, rtol=0)

    # 3) Ragged M + single batch: exercises wrapper-side row padding and the
    #    N==1 "at least 2 grid steps" rule (dual-TC sharding path).
    M2 = 200
    sf2 = sampled_features[:1, :, :M2]
    rd2 = ray_directions[:1, :M2]
    ref2 = reference_forward(sf2, params)
    out2 = lrm_osg_decoder_forward(sf2, rd2, params, use_bf16=False)
    out2 = jax.tree_util.tree_map(jax.block_until_ready, out2)
    assert out2["rgb"].shape == (1, M2, 3)
    assert out2["sigma"].shape == (1, M2, 1)
    assert jnp.allclose(out2["rgb"], ref2["rgb"], atol=1e-5, rtol=1e-5)
    assert jnp.allclose(out2["sigma"], ref2["sigma"], atol=1e-5, rtol=1e-5)

    print("KERNEL_OK")
</pallas_src>

<mosaic_0001>
module attributes {stable_mosaic.version = 11 : i64} {
  func.func @_decoder_kernel(%arg0: i32, %arg1: i32, %arg2: memref<1x3x256x32xf32, #tpu.memory_space<vmem>>, %arg3: memref<96x64xf32, #tpu.memory_space<vmem>>, %arg4: memref<1x64xf32, #tpu.memory_space<vmem>>, %arg5: memref<2x64x64xf32, #tpu.memory_space<vmem>>, %arg6: memref<2x1x64xf32, #tpu.memory_space<vmem>>, %arg7: memref<64x4xf32, #tpu.memory_space<vmem>>, %arg8: memref<1x4xf32, #tpu.memory_space<vmem>>, %arg9: memref<1x256x4xf32, #tpu.memory_space<vmem>>, %arg10: memref<256x96xf32, #tpu.memory_space<vmem>>) attributes {dimension_semantics = [#tpu.dimension_semantics<parallel>, #tpu.dimension_semantics<parallel>], iteration_bounds = array<i64: 2, 1>, scalar_prefetch = 0 : i64, scratch_operands = 1 : i64, tpu.core_type = #tpu.core_type<tc>, window_params = [{transform_indices = @transform_0, window_bounds = array<i64: 1, 3, 256, 32>}, {pipeline_mode = #tpu.pipeline_mode<synchronous>, transform_indices = @transform_1, window_bounds = array<i64: 96, 64>}, {pipeline_mode = #tpu.pipeline_mode<synchronous>, transform_indices = @transform_2, window_bounds = array<i64: 1, 64>}, {pipeline_mode = #tpu.pipeline_mode<synchronous>, transform_indices = @transform_3, window_bounds = array<i64: 2, 64, 64>}, {pipeline_mode = #tpu.pipeline_mode<synchronous>, transform_indices = @transform_4, window_bounds = array<i64: 2, 1, 64>}, {pipeline_mode = #tpu.pipeline_mode<synchronous>, transform_indices = @transform_5, window_bounds = array<i64: 64, 4>}, {pipeline_mode = #tpu.pipeline_mode<synchronous>, transform_indices = @transform_6, window_bounds = array<i64: 1, 4>}, {transform_indices = @transform_7, window_bounds = array<i64: 1, 256, 4>}]} {
    %c0 = arith.constant 0 : index
    %c0_0 = arith.constant 0 : index
    %c0_1 = arith.constant 0 : index
    %c0_2 = arith.constant 0 : index
    %0 = vector.load %arg2[%c0, %c0_0, %c0_1, %c0_2] : memref<1x3x256x32xf32, #tpu.memory_space<vmem>>, vector<1x1x256x32xf32>
    %1 = vector.shape_cast %0 : vector<1x1x256x32xf32> to vector<256x32xf32>
    %c0_3 = arith.constant 0 : index
    %c0_4 = arith.constant 0 : index
    %2 = vector.load %arg10[%c0_3, %c0_4] : memref<256x96xf32, #tpu.memory_space<vmem>>, vector<256x32xf32>
    tpu.vector_store %arg10[%c0_3, %c0_4], %1 {strides = array<i32>} : memref<256x96xf32, #tpu.memory_space<vmem>>, vector<256x32xf32>,
    %c0_5 = arith.constant 0 : index
    %c1 = arith.constant 1 : index
    %c0_6 = arith.constant 0 : index
    %c0_7 = arith.constant 0 : index
    %3 = vector.load %arg2[%c0_5, %c1, %c0_6, %c0_7] : memref<1x3x256x32xf32, #tpu.memory_space<vmem>>, vector<1x1x256x32xf32>
    %4 = vector.shape_cast %3 : vector<1x1x256x32xf32> to vector<256x32xf32>
    %c0_8 = arith.constant 0 : index
    %c32 = arith.constant 32 : index
    %5 = vector.load %arg10[%c0_8, %c32] : memref<256x96xf32, #tpu.memory_space<vmem>>, vector<256x32xf32>
    tpu.vector_store %arg10[%c0_8, %c32], %4 {strides = array<i32>} : memref<256x96xf32, #tpu.memory_space<vmem>>, vector<256x32xf32>,
    %c0_9 = arith.constant 0 : index
    %c2 = arith.constant 2 : index
    %c0_10 = arith.constant 0 : index
    %c0_11 = arith.constant 0 : index
    %6 = vector.load %arg2[%c0_9, %c2, %c0_10, %c0_11] : memref<1x3x256x32xf32, #tpu.memory_space<vmem>>, vector<1x1x256x32xf32>
    %7 = vector.shape_cast %6 : vector<1x1x256x32xf32> to vector<256x32xf32>
    %c0_12 = arith.constant 0 : index
    %c64 = arith.constant 64 : index
    %8 = vector.load %arg10[%c0_12, %c64] : memref<256x96xf32, #tpu.memory_space<vmem>>, vector<256x32xf32>
    tpu.vector_store %arg10[%c0_12, %c64], %7 {strides = array<i32>} : memref<256x96xf32, #tpu.memory_space<vmem>>, vector<256x32xf32>,
    %c0_13 = arith.constant 0 : index
    %c0_14 = arith.constant 0 : index
    %9 = vector.load %arg10[%c0_13, %c0_14] : memref<256x96xf32, #tpu.memory_space<vmem>>, vector<256x96xf32>
    %c0_15 = arith.constant 0 : index
    %c0_16 = arith.constant 0 : index
    %10 = vector.load %arg3[%c0_15, %c0_16] : memref<96x64xf32, #tpu.memory_space<vmem>>, vector<96x64xf32>
    %cst = arith.constant dense<0.000000e+00> : vector<256x64xf32>
    %11 = tpu.matmul %9, %10, %cst {dimension_numbers = #tpu.dot_dimension_numbers<[1], [0], [0], [1], [0, 0, 1, 1], [], []>} : vector<256x96xf32>, vector<96x64xf32>, vector<256x64xf32> -> vector<256x64xf32>
    %c0_17 = arith.constant 0 : index
    %c0_18 = arith.constant 0 : index
    %12 = vector.load %arg4[%c0_17, %c0_18] : memref<1x64xf32, #tpu.memory_space<vmem>>, vector<1x64xf32>
    %13 = vector.broadcast %12 : vector<1x64xf32> to vector<256x64xf32>
    %14 = arith.addf %11, %13 : vector<256x64xf32>
    %cst_19 = arith.constant 0.000000e+00 : f32
    %15 = vector.broadcast %cst_19 : f32 to vector<256x64xf32>
    %16 = arith.maximumf %14, %15 : vector<256x64xf32>
    %c0_20 = arith.constant 0 : index
    %c0_21 = arith.constant 0 : index
    %c0_22 = arith.constant 0 : index
    %17 = vector.load %arg5[%c0_20, %c0_21, %c0_22] : memref<2x64x64xf32, #tpu.memory_space<vmem>>, vector<1x64x64xf32>
    %18 = vector.shape_cast %17 : vector<1x64x64xf32> to vector<64x64xf32>
    %cst_23 = arith.constant dense<0.000000e+00> : vector<256x64xf32>
    %19 = tpu.matmul %16, %18, %cst_23 {dimension_numbers = #tpu.dot_dimension_numbers<[1], [0], [0], [1], [0, 0, 1, 1], [], []>} : vector<256x64xf32>, vector<64x64xf32>, vector<256x64xf32> -> vector<256x64xf32>
    %c0_24 = arith.constant 0 : index
    %c0_25 = arith.constant 0 : index
    %c0_26 = arith.constant 0 : index
    %20 = vector.load %arg6[%c0_24, %c0_25, %c0_26] : memref<2x1x64xf32, #tpu.memory_space<vmem>>, vector<1x1x64xf32>
    %21 = vector.shape_cast %20 : vector<1x1x64xf32> to vector<1x64xf32>
    %22 = vector.broadcast %21 : vector<1x64xf32> to vector<256x64xf32>
    %23 = arith.addf %19, %22 : vector<256x64xf32>
    %cst_27 = arith.constant 0.000000e+00 : f32
    %24 = vector.broadcast %cst_27 : f32 to vector<256x64xf32>
    %25 = arith.maximumf %23, %24 : vector<256x64xf32>
    %c1_28 = arith.constant 1 : index
    %c0_29 = arith.constant 0 : index
    %c0_30 = arith.constant 0 : index
    %26 = vector.load %arg5[%c1_28, %c0_29, %c0_30] : memref<2x64x64xf32, #tpu.memory_space<vmem>>, vector<1x64x64xf32>
    %27 = vector.shape_cast %26 : vector<1x64x64xf32> to vector<64x64xf32>
    %cst_31 = arith.constant dense<0.000000e+00> : vector<256x64xf32>
    %28 = tpu.matmul %25, %27, %cst_31 {dimension_numbers = #tpu.dot_dimension_numbers<[1], [0], [0], [1], [0, 0, 1, 1], [], []>} : vector<256x64xf32>, vector<64x64xf32>, vector<256x64xf32> -> vector<256x64xf32>
    %c1_32 = arith.constant 1 : index
    %c0_33 = arith.constant 0 : index
    %c0_34 = arith.constant 0 : index
    %29 = vector.load %arg6[%c1_32, %c0_33, %c0_34] : memref<2x1x64xf32, #tpu.memory_space<vmem>>, vector<1x1x64xf32>
    %30 = vector.shape_cast %29 : vector<1x1x64xf32> to vector<1x64xf32>
    %31 = vector.broadcast %30 : vector<1x64xf32> to vector<256x64xf32>
    %32 = arith.addf %28, %31 : vector<256x64xf32>
    %cst_35 = arith.constant 0.000000e+00 : f32
    %33 = vector.broadcast %cst_35 : f32 to vector<256x64xf32>
    %34 = arith.maximumf %32, %33 : vector<256x64xf32>
    %c0_36 = arith.constant 0 : index
    %c0_37 = arith.constant 0 : index
    %35 = vector.load %arg7[%c0_36, %c0_37] : memref<64x4xf32, #tpu.memory_space<vmem>>, vector<64x4xf32>
    %cst_38 = arith.constant dense<0.000000e+00> : vector<256x4xf32>
    %36 = tpu.matmul %34, %35, %cst_38 {dimension_numbers = #tpu.dot_dimension_numbers<[1], [0], [0], [1], [0, 0, 1, 1], [], []>} : vector<256x64xf32>, vector<64x4xf32>, vector<256x4xf32> -> vector<256x4xf32>
    %c0_39 = arith.constant 0 : index
    %c0_40 = arith.constant 0 : index
    %37 = vector.load %arg8[%c0_39, %c0_40] : memref<1x4xf32, #tpu.memory_space<vmem>>, vector<1x4xf32>
    %38 = vector.broadcast %37 : vector<1x4xf32> to vector<256x4xf32>
    %39 = arith.addf %36, %38 : vector<256x4xf32>
    %40 = tpu.iota {dimensions = array<i32: 1>} : vector<256x4xi32>
    %41 = arith.negf %39 : vector<256x4xf32>
    %42 = math.exp %41 : vector<256x4xf32>
    %cst_41 = arith.constant 1.000000e+00 : f32
    %43 = vector.broadcast %cst_41 : f32 to vector<256x4xf32>
    %44 = arith.addf %43, %42 : vector<256x4xf32>
    %45 = arith.divf %43, %44 : vector<256x4xf32>
    %cst_42 = arith.constant 1.002000e+00 : f32
    %46 = vector.broadcast %cst_42 : f32 to vector<256x4xf32>
    %47 = arith.mulf %45, %46 : vector<256x4xf32>
    %cst_43 = arith.constant 1.000000e-03 : f32
    %48 = vector.broadcast %cst_43 : f32 to vector<256x4xf32>
    %49 = arith.subf %47, %48 : vector<256x4xf32>
    %c0_i32 = arith.constant 0 : i32
    %50 = vector.broadcast %c0_i32 : i32 to vector<256x4xi32>
    %51 = arith.cmpi eq, %40, %50 : vector<256x4xi32>
    %52 = arith.select %51, %39, %49 : vector<256x4xi1>, vector<256x4xf32>
    %c0_44 = arith.constant 0 : index
    %c0_45 = arith.constant 0 : index
    %c0_46 = arith.constant 0 : index
    %53 = vector.load %arg9[%c0_44, %c0_45, %c0_46] : memref<1x256x4xf32, #tpu.memory_space<vmem>>, vector<1x256x4xf32>
    %54 = vector.shape_cast %53 : vector<1x256x4xf32> to vector<256x4xf32>
    %55 = vector.shape_cast %52 : vector<256x4xf32> to vector<1x256x4xf32>
    tpu.vector_store %arg9[%c0_44, %c0_45, %c0_46], %55 {strides = array<i32>} : memref<1x256x4xf32, #tpu.memory_space<vmem>>, vector<1x256x4xf32>,
    return
  }
  func.func @transform_0(%arg0: i32, %arg1: i32) -> (i32, i32, i32, i32) {
    %c0_i32 = arith.constant 0 : i32
    %c0_i32_0 = arith.constant 0 : i32
    %c0_i32_1 = arith.constant 0 : i32
    return %arg0, %c0_i32, %arg1, %c0_i32_0 : i32, i32, i32, i32
  }
  func.func @transform_1(%arg0: i32, %arg1: i32) -> (i32, i32) {
    %c0_i32 = arith.constant 0 : i32
    %c0_i32_0 = arith.constant 0 : i32
    %c0_i32_1 = arith.constant 0 : i32
    return %c0_i32, %c0_i32_0 : i32, i32
  }
  func.func @transform_2(%arg0: i32, %arg1: i32) -> (i32, i32) {
    %c0_i32 = arith.constant 0 : i32
    %c0_i32_0 = arith.constant 0 : i32
    %c0_i32_1 = arith.constant 0 : i32
    return %c0_i32, %c0_i32_0 : i32, i32
  }
  func.func @transform_3(%arg0: i32, %arg1: i32) -> (i32, i32, i32) {
    %c0_i32 = arith.constant 0 : i32
    %c0_i32_0 = arith.constant 0 : i32
    %c0_i32_1 = arith.constant 0 : i32
    %c0_i32_2 = arith.constant 0 : i32
    return %c0_i32, %c0_i32_0, %c0_i32_1 : i32, i32, i32
  }
  func.func @transform_4(%arg0: i32, %arg1: i32) -> (i32, i32, i32) {
    %c0_i32 = arith.constant 0 : i32
    %c0_i32_0 = arith.constant 0 : i32
    %c0_i32_1 = arith.constant 0 : i32
    %c0_i32_2 = arith.constant 0 : i32
    return %c0_i32, %c0_i32_0, %c0_i32_1 : i32, i32, i32
  }
  func.func @transform_5(%arg0: i32, %arg1: i32) -> (i32, i32) {
    %c0_i32 = arith.constant 0 : i32
    %c0_i32_0 = arith.constant 0 : i32
    %c0_i32_1 = arith.constant 0 : i32
    return %c0_i32, %c0_i32_0 : i32, i32
  }
  func.func @transform_6(%arg0: i32, %arg1: i32) -> (i32, i32) {
    %c0_i32 = arith.constant 0 : i32
    %c0_i32_0 = arith.constant 0 : i32
    %c0_i32_1 = arith.constant 0 : i32
    return %c0_i32, %c0_i32_0 : i32, i32
  }
  func.func @transform_7(%arg0: i32, %arg1: i32) -> (i32, i32, i32) {
    %c0_i32 = arith.constant 0 : i32
    %c0_i32_0 = arith.constant 0 : i32
    return %arg0, %arg1, %c0_i32 : i32, i32, i32
  }
}

</mosaic_0001>

<llo_original>
// kernel: lrm_osg_decoder_forward.1
$region0: #{lrm_osg_decoder_forward.1}
  #allocation0 [shape = 'u32[]', space=smem, size = 0x4, offset = 0x4, fixed_abs, tag = 'smem constant byte address 0x4 - core index']
  #allocation1 [shape = 'u32[144,128]{1,0:T(1,128)}', space=vmem, size = 0x12000, scoped, tag = 'internal scratch']
  #allocation2 [shape = 'f32[256,96]{1,0:T(8,128)}', space=vmem, size = 0x20000, scoped, tag = 'scratch operand']
  %s0 = inlined_call_operand.vmem [shape: f32[2,3,256,32], index: 0, kind: input, shape index: {}]
  %s1 = inlined_call_operand.vmem [shape: f32[96,64], index: 1, kind: input, shape index: {}]
  %s2 = inlined_call_operand.vmem [shape: f32[1,64], index: 2, kind: input, shape index: {}]
  %s3 = inlined_call_operand.vmem [shape: f32[2,64,64], index: 3, kind: input, shape index: {}]
  %s4 = inlined_call_operand.vmem [shape: f32[2,1,64], index: 4, kind: input, shape index: {}]
  %s5 = inlined_call_operand.vmem [shape: f32[64,4], index: 5, kind: input, shape index: {}]
  %s6 = inlined_call_operand.vmem [shape: f32[1,4], index: 6, kind: input, shape index: {}]
  %s7 = inlined_call_operand.vmem [shape: f32[2,256,4], index: 7, kind: output, shape index: {}]
  %s8 = sld [smem:[#allocation0]]
  $region61: #{lrm_osg_decoder_forward.1} parent=0
    _
  %s10 = ssub.s32 1, %s8
  %s11 = scalar_select 0, %s10, %s8
  loop: start=0, step=1, limit=4
  $region2: #{lrm_osg_decoder_forward.1} parent=0 // loop_pre_header
    _
  $region3: #{lrm_osg_decoder_forward.1} parent=0 // loop_header
    %s13 = sphi 0, %s17
    %p14 = scmp.ge.s32.totalorder %s13, 4
    %s20 = sphi 0, %s32
    %s21 = sphi 0, %s28
    %s22 = sphi 0, %s20
    %s23 = sphi 0, %s21
    %s24 = sphi 0, %s22
    %s25 = sphi 0, %s23
    %s37 = sphi 0, %s39
    %s40 = sphi 0, %s37
    %s41 = sphi 0, %s40
    %s57 = sphi 0, %s41
    %s61 = sphi 0, %s61
    %s63 = sphi 0, %s61
    %s64 = sphi 0, %s63
    %s78 = sphi 0, %s64
    %s82 = sphi 0, %s82
    %s84 = sphi 0, %s82
    %s85 = sphi 0, %s84
    %s99 = sphi 0, %s85
    %s103 = sphi 0, %s103
    %s105 = sphi 0, %s103
    %s106 = sphi 0, %s105
    %s120 = sphi 0, %s106
    %s124 = sphi 0, %s124
    %s126 = sphi 0, %s124
    %s127 = sphi 0, %s126
    %s141 = sphi 0, %s127
    %s145 = sphi 0, %s145
    %s147 = sphi 0, %s145
    %s148 = sphi 0, %s147
    %s162 = sphi 0, %s148
    %s166 = sphi 0, %s166
    %s168 = sphi 0, %s166
    %s169 = sphi 0, %s168
    %s183 = sphi 0, %s169
    %s191 = sphi 0, %s193
    %s194 = sphi 0, %s191
    %s195 = sphi 0, %s194
    %s211 = sphi 0, %s195
  $region4: #{lrm_osg_decoder_forward.1} parent=0 // loop_header_branch
    %16 = sbr.rel (%p14) target = $region8
  $region5: #{lrm_osg_decoder_forward.1} parent=0 // loop_body
    %s18 = ssub.s32 %s13, 1
    %s19 = ssub.s32 %s13, 2
    %s26 = sadd.s32 1, %s21
    %p27 = scmp.ge.s32.totalorder %s26, 1
    %s28 = scalar_select %p27, 0, %s26
    %s29 = sadd.s32 1, %s20
    %s30 = scalar_select %p27, %s29, %s20
    %p31 = scmp.ge.s32.totalorder %s30, 2
    %s32 = scalar_select %p31, 0, %s30
    %s33 = ssub.s32 %s20, %s32
    %s34 = ssub.s32 %s21, %s28
    %s35 = sor.u32 %s33, %s34
    %p36 = scmp.eq.s32.totalorder %s35, 0
    %s38 = sadd.s32 %s37, 1
    %s39 = scalar_select %p36, %s37, %s38
    %p42 = pneg %p36
    %p43 = scmp.eq.s32.totalorder %s13, 1
    %p44 = por %p42, %p43
    %p45 = scmp.ne.s32.totalorder %s37, %s40
    %p46 = scmp.eq.s32.totalorder %s13, 0
    %p47 = por %p45, %p46
    %p48 = scmp.ne.s32.totalorder %s37, %s40
    %p49 = scmp.eq.s32.totalorder %s18, 1
    %p50 = por %p48, %p49
    %p51 = scmp.ne.s32.totalorder %s40, %s41
    %p52 = scmp.eq.s32.totalorder %s18, 0
    %p53 = por %p51, %p52
    %p54 = scmp.ne.s32.totalorder %s40, %s41
    %p55 = scmp.eq.s32.totalorder %s19, 1
    %p56 = por %p54, %p55
    %p58 = scmp.ne.s32.totalorder %s41, %s57
    %p59 = scmp.eq.s32.totalorder %s19, 0
    %p60 = por %p58, %p59
    %s62 = sadd.s32 %s61, 1
    %p65 = scmp.eq.s32.totalorder %s13, 1
    %p66 = scmp.ne.s32.totalorder %s61, %s63
    %p67 = scmp.eq.s32.totalorder %s13, 0
    %p68 = por %p66, %p67
    %p69 = scmp.ne.s32.totalorder %s61, %s63
    %p70 = scmp.eq.s32.totalorder %s18, 1
    %p71 = por %p69, %p70
    %p72 = scmp.ne.s32.totalorder %s63, %s64
    %p73 = scmp.eq.s32.totalorder %s18, 0
    %p74 = por %p72, %p73
    %p75 = scmp.ne.s32.totalorder %s63, %s64
    %p76 = scmp.eq.s32.totalorder %s19, 1
    %p77 = por %p75, %p76
    %p79 = scmp.ne.s32.totalorder %s64, %s78
    %p80 = scmp.eq.s32.totalorder %s19, 0
    %p81 = por %p79, %p80
    %s83 = sadd.s32 %s82, 1
    %p86 = scmp.eq.s32.totalorder %s13, 1
    %p87 = scmp.ne.s32.totalorder %s82, %s84
    %p88 = scmp.eq.s32.totalorder %s13, 0
    %p89 = por %p87, %p88
    %p90 = scmp.ne.s32.totalorder %s82, %s84
    %p91 = scmp.eq.s32.totalorder %s18, 1
    %p92 = por %p90, %p91
    %p93 = scmp.ne.s32.totalorder %s84, %s85
    %p94 = scmp.eq.s32.totalorder %s18, 0
    %p95 = por %p93, %p94
    %p96 = scmp.ne.s32.totalorder %s84, %s85
    %p97 = scmp.eq.s32.totalorder %s19, 1
    %p98 = por %p96, %p97
    %p100 = scmp.ne.s32.totalorder %s85, %s99
    %p101 = scmp.eq.s32.totalorder %s19, 0
    %p102 = por %p100, %p101
    %s104 = sadd.s32 %s103, 1
    %p107 = scmp.eq.s32.totalorder %s13, 1
    %p108 = scmp.ne.s32.totalorder %s103, %s105
    %p109 = scmp.eq.s32.totalorder %s13, 0
    %p110 = por %p108, %p109
    %p111 = scmp.ne.s32.totalorder %s103, %s105
    %p112 = scmp.eq.s32.totalorder %s18, 1
    %p113 = por %p111, %p112
    %p114 = scmp.ne.s32.totalorder %s105, %s106
    %p115 = scmp.eq.s32.totalorder %s18, 0
    %p116 = por %p114, %p115
    %p117 = scmp.ne.s32.totalorder %s105, %s106
    %p118 = scmp.eq.s32.totalorder %s19, 1
    %p119 = por %p117, %p118
    %p121 = scmp.ne.s32.totalorder %s106, %s120
    %p122 = scmp.eq.s32.totalorder %s19, 0
    %p123 = por %p121, %p122
    %s125 = sadd.s32 %s124, 1
    %p128 = scmp.eq.s32.totalorder %s13, 1
    %p129 = scmp.ne.s32.totalorder %s124, %s126
    %p130 = scmp.eq.s32.totalorder %s13, 0
    %p131 = por %p129, %p130
    %p132 = scmp.ne.s32.totalorder %s124, %s126
    %p133 = scmp.eq.s32.totalorder %s18, 1
    %p134 = por %p132, %p133
    %p135 = scmp.ne.s32.totalorder %s126, %s127
    %p136 = scmp.eq.s32.totalorder %s18, 0
    %p137 = por %p135, %p136
    %p138 = scmp.ne.s32.totalorder %s126, %s127
    %p139 = scmp.eq.s32.totalorder %s19, 1
    %p140 = por %p138, %p139
    %p142 = scmp.ne.s32.totalorder %s127, %s141
    %p143 = scmp.eq.s32.totalorder %s19, 0
    %p144 = por %p142, %p143
    %s146 = sadd.s32 %s145, 1
    %p149 = scmp.eq.s32.totalorder %s13, 1
    %p150 = scmp.ne.s32.totalorder %s145, %s147
    %p151 = scmp.eq.s32.totalorder %s13, 0
    %p152 = por %p150, %p151
    %p153 = scmp.ne.s32.totalorder %s145, %s147
    %p154 = scmp.eq.s32.totalorder %s18, 1
    %p155 = por %p153, %p154
    %p156 = scmp.ne.s32.totalorder %s147, %s148
    %p157 = scmp.eq.s32.totalorder %s18, 0
    %p158 = por %p156, %p157
    %p159 = scmp.ne.s32.totalorder %s147, %s148
    %p160 = scmp.eq.s32.totalorder %s19, 1
    %p161 = por %p159, %p160
    %p163 = scmp.ne.s32.totalorder %s148, %s162
    %p164 = scmp.eq.s32.totalorder %s19, 0
    %p165 = por %p163, %p164
    %s167 = sadd.s32 %s166, 1
    %p170 = scmp.eq.s32.totalorder %s13, 1
    %p171 = scmp.ne.s32.totalorder %s166, %s168
    %p172 = scmp.eq.s32.totalorder %s13, 0
    %p173 = por %p171, %p172
    %p174 = scmp.ne.s32.totalorder %s166, %s168
    %p175 = scmp.eq.s32.totalorder %s18, 1
    %p176 = por %p174, %p175
    %p177 = scmp.ne.s32.totalorder %s168, %s169
    %p178 = scmp.eq.s32.totalorder %s18, 0
    %p179 = por %p177, %p178
    %p180 = scmp.ne.s32.totalorder %s168, %s169
    %p181 = scmp.eq.s32.totalorder %s19, 1
    %p182 = por %p180, %p181
    %p184 = scmp.ne.s32.totalorder %s169, %s183
    %p185 = scmp.eq.s32.totalorder %s19, 0
    %p186 = por %p184, %p185
    %s187 = ssub.s32 %s20, %s32
    %s188 = ssub.s32 %s21, %s28
    %s189 = sor.u32 %s187, %s188
    %p190 = scmp.eq.s32.totalorder %s189, 0
    %s192 = sadd.s32 %s191, 1
    %s193 = scalar_select %p190, %s191, %s192
    %p196 = pneg %p190
    %p197 = scmp.eq.s32.totalorder %s13, 1
    %p198 = por %p196, %p197
    %p199 = scmp.ne.s32.totalorder %s191, %s194
    %p200 = scmp.eq.s32.totalorder %s13, 0
    %p201 = por %p199, %p200
    %p202 = scmp.ne.s32.totalorder %s191, %s194
    %p203 = scmp.eq.s32.totalorder %s18, 1
    %p204 = por %p202, %p203
    %p205 = scmp.ne.s32.totalorder %s194, %s195
    %p206 = scmp.eq.s32.totalorder %s18, 0
    %p207 = por %p205, %p206
    %p208 = scmp.ne.s32.totalorder %s194, %s195
    %p209 = scmp.eq.s32.totalorder %s19, 1
    %p210 = por %p208, %p209
    %p212 = scmp.ne.s32.totalorder %s195, %s211
    %p213 = scmp.eq.s32.totalorder %s19, 0
    %p214 = por %p212, %p213
    %p215 = scmp.le.s32.totalorder 1, %s13
    %p216 = scmp.lt.s32.totalorder %s13, 3
    %p217 = pnand %p215, %p216
    %p218 = pneg %p217
    // Predicated region
    $region9: #{lrm_osg_decoder_forward.1} parent=5 // pred_check
      _
    $region10: #{lrm_osg_decoder_forward.1} parent=5 // pred_check_branch
      %220 = sbr.rel (%p217) target = $region12
    $region11: #{lrm_osg_decoder_forward.1} parent=5 // pred_region
      %s221 = ssub.s32 %s13, 1
      // Predicated region
      $region13: #{lrm_osg_decoder_forward.1} parent=11 // pred_check
        %p222 = pneg %p74
      $region14: #{lrm_osg_decoder_forward.1} parent=11 // pred_check_branch
        %224 = sbr.rel (%p222) target = $region16
      $region15: #{lrm_osg_decoder_forward.1} parent=11 // pred_region
        _
      $region16: #{lrm_osg_decoder_forward.1} parent=11 // pred_fallthru
        _
      // Predicated region
      $region17: #{lrm_osg_decoder_forward.1} parent=11 // pred_check
        %p225 = pneg %p95
      $region18: #{lrm_osg_decoder_forward.1} parent=11 // pred_check_branch
        %227 = sbr.rel (%p225) target = $region20
      $region19: #{lrm_osg_decoder_forward.1} parent=11 // pred_region
        _
      $region20: #{lrm_osg_decoder_forward.1} parent=11 // pred_fallthru
        _
      // Predicated region
      $region21: #{lrm_osg_decoder_forward.1} parent=11 // pred_check
        %p228 = pneg %p116
      $region22: #{lrm_osg_decoder_forward.1} parent=11 // pred_check_branch
        %230 = sbr.rel (%p228) target = $region24
      $region23: #{lrm_osg_decoder_forward.1} parent=11 // pred_region
        _
      $region24: #{lrm_osg_decoder_forward.1} parent=11 // pred_fallthru
        _
      // Predicated region
      $region25: #{lrm_osg_decoder_forward.1} parent=11 // pred_check
        %p231 = pneg %p137
      $region26: #{lrm_osg_decoder_forward.1} parent=11 // pred_check_branch
        %233 = sbr.rel (%p231) target = $region28
      $region27: #{lrm_osg_decoder_forward.1} parent=11 // pred_region
        _
      $region28: #{lrm_osg_decoder_forward.1} parent=11 // pred_fallthru
        _
      // Predicated region
      $region29: #{lrm_osg_decoder_forward.1} parent=11 // pred_check
        %p234 = pneg %p158
      $region30: #{lrm_osg_decoder_forward.1} parent=11 // pred_check_branch
        %236 = sbr.rel (%p234) target = $region32
      $region31: #{lrm_osg_decoder_forward.1} parent=11 // pred_region
        _
      $region32: #{lrm_osg_decoder_forward.1} parent=11 // pred_fallthru
        _
      // Predicated region
      $region33: #{lrm_osg_decoder_forward.1} parent=11 // pred_check
        %p237 = pneg %p179
      $region34: #{lrm_osg_decoder_forward.1} parent=11 // pred_check_branch
        %239 = sbr.rel (%p237) target = $region36
      $region35: #{lrm_osg_decoder_forward.1} parent=11 // pred_region
        _
      $region36: #{lrm_osg_decoder_forward.1} parent=11 // pred_fallthru
        _
    $region12: #{lrm_osg_decoder_forward.1} parent=5 // pred_fallthru
      _
    %p240 = scmp.lt.s32.totalorder %s13, 2
    // Predicated region
    $region37: #{lrm_osg_decoder_forward.1} parent=5 // pred_check
      %p241 = pneg %p240
    $region38: #{lrm_osg_decoder_forward.1} parent=5 // pred_check_branch
      %243 = sbr.rel (%p241) target = $region40
    $region39: #{lrm_osg_decoder_forward.1} parent=5 // pred_region
      // Predicated region
      $region41: #{lrm_osg_decoder_forward.1} parent=39 // pred_check
        %p244 = pneg %p47
      $region42: #{lrm_osg_decoder_forward.1} parent=39 // pred_check_branch
        %246 = sbr.rel (%p244) target = $region44
      $region43: #{lrm_osg_decoder_forward.1} parent=39 // pred_region
        %s247 = smul.u32 32, %s21
        %p248 = scmp.lt.s32.totalorder %s20, 1
        %s249 = scalar_select %p248, %s20, 1
        %p250 = scmp.lt.s32.totalorder %s247, 31
        %s251 = scalar_select %p250, %s247, 31
        %s252 = smul.addr %s249, 96
        %s253 = sadd.s32 %s251, %s252
        %s254 = smul.addr %s253, 8
        %s255 = scalar_lea.vmem %s0, %s254
        %s256 = smul.u32 32, %s21
      $region44: #{lrm_osg_decoder_forward.1} parent=39 // pred_fallthru
        _
    $region40: #{lrm_osg_decoder_forward.1} parent=5 // pred_fallthru
      _
    %p257 = scmp.le.s32.totalorder 1, %s13
    %p258 = scmp.lt.s32.totalorder %s13, 3
    %p259 = pnand %p257, %p258
    %p260 = pneg %p259
    // Predicated region
    $region45: #{lrm_osg_decoder_forward.1} parent=5 // pred_check
      _
    $region46: #{lrm_osg_decoder_forward.1} parent=5 // pred_check_branch
      %262 = sbr.rel (%p259) target = $region48
    $region47: #{lrm_osg_decoder_forward.1} parent=5 // pred_region
      %s263 = ssub.s32 %s13, 1
      %s264 = smul.u32 32, %s23
      %p265 = scmp.lt.s32.totalorder %s22, 1
      %s266 = scalar_select %p265, %s22, 1
      %p267 = scmp.lt.s32.totalorder %s264, 31
      %s268 = scalar_select %p267, %s264, 31
      %s269 = smul.addr %s266, 96
      %s270 = sadd.s32 %s268, %s269
      %s271 = smul.addr %s270, 8
      %s272 = scalar_lea.vmem %s0, %s271
      %p273 = pneg %p53
      %p274 = pneg %p50
      %p275 = pneg %p74
      %p276 = pneg %p71
      %p277 = pneg %p95
      %p278 = pneg %p92
      %p279 = pneg %p116
      %p280 = pneg %p113
      %p281 = pneg %p137
      %p282 = pneg %p134
      %p283 = pneg %p158
      %p284 = pneg %p155
      %p285 = pneg %p179
      %p286 = pneg %p176
      %p287 = pneg %p207
      %p288 = pneg %p204
      %s289 = smul.u32 32, %s23
      %p290 = scmp.lt.s32.totalorder %s22, 1
      %s291 = scalar_select %p290, %s22, 1
      %p292 = scmp.lt.s32.totalorder %s289, 31
      %s293 = scalar_select %p292, %s289, 31
      %s294 = smul.addr %s291, 32
      %s295 = sadd.s32 %s293, %s294
      %s296 = smul.addr %s295, 8
      %s297 = scalar_lea.vmem %s7, %s296
      %s298 = smul.u32 32, %s23
      %p299 = scmp.lt.s32.totalorder %s22, 1
      %s300 = scalar_select %p299, %s22, 1
      %p301 = scmp.lt.s32.totalorder %s298, 31
      %s302 = scalar_select %p301, %s298, 31
      %s303 = smul.addr %s300, 96
      %s304 = sadd.s32 %s302, %s303
      %s305 = smul.addr %s304, 8
      %s306 = scalar_lea.vmem %s0, %s305
      %s307 = smul.u32 32, %s23
      %s308 = smul.u32 32, %s23
      %p309 = scmp.lt.s32.totalorder %s22, 1
      %s310 = scalar_select %p309, %s22, 1
      %p311 = scmp.lt.s32.totalorder %s308, 31
      %s312 = scalar_select %p311, %s308, 31
      %s313 = smul.addr %s310, 32
      %s314 = sadd.s32 %s312, %s313
      %s315 = smul.addr %s314, 8
      %s316 = scalar_lea.vmem %s7, %s315
      %s317 = smul.u32 32, %s23
      %v318 = vld [vmem:[%s306] sm:$0xff]
      %v319 = vld [vmem:[%s306 + $0x8] sm:$0xff]
      %v320 = vld [vmem:[%s306 + $0x10] sm:$0xff]
      %v321 = vld [vmem:[%s306 + $0x18] sm:$0xff]
      %v322 = vld [vmem:[%s306 + $0x20] sm:$0xff]
      %v323 = vld [vmem:[%s306 + $0x28] sm:$0xff]
      %v324 = vld [vmem:[%s306 + $0x30] sm:$0xff]
      %v325 = vld [vmem:[%s306 + $0x38] sm:$0xff]
      %v326 = vld [vmem:[%s306 + $0x40] sm:$0xff]
      %v327 = vld [vmem:[%s306 + $0x48] sm:$0xff]
      %v328 = vld [vmem:[%s306 + $0x50] sm:$0xff]
      %v329 = vld [vmem:[%s306 + $0x58] sm:$0xff]
      %v330 = vld [vmem:[%s306 + $0x60] sm:$0xff]
      %v331 = vld [vmem:[%s306 + $0x68] sm:$0xff]
      %v332 = vld [vmem:[%s306 + $0x70] sm:$0xff]
      %v333 = vld [vmem:[%s306 + $0x78] sm:$0xff]
      %v334 = vld [vmem:[%s306 + $0x80] sm:$0xff]
      %v335 = vld [vmem:[%s306 + $0x88] sm:$0xff]
      %v336 = vld [vmem:[%s306 + $0x90] sm:$0xff]
      %v337 = vld [vmem:[%s306 + $0x98] sm:$0xff]
      %v338 = vld [vmem:[%s306 + $0xa0] sm:$0xff]
      %v339 = vld [vmem:[%s306 + $0xa8] sm:$0xff]
      %v340 = vld [vmem:[%s306 + $0xb0] sm:$0xff]
      %v341 = vld [vmem:[%s306 + $0xb8] sm:$0xff]
      %v342 = vld [vmem:[%s306 + $0xc0] sm:$0xff]
      %v343 = vld [vmem:[%s306 + $0xc8] sm:$0xff]
      %v344 = vld [vmem:[%s306 + $0xd0] sm:$0xff]
      %v345 = vld [vmem:[%s306 + $0xd8] sm:$0xff]
      %v346 = vld [vmem:[%s306 + $0xe0] sm:$0xff]
      %v347 = vld [vmem:[%s306 + $0xe8] sm:$0xff]
      %v348 = vld [vmem:[%s306 + $0xf0] sm:$0xff]
      %v349 = vld [vmem:[%s306 + $0xf8] sm:$0xff]
      %vm350 = vcmask 261120
      %351 = vst.msk [vmem:[#allocation2] sm:$0xff] %vm350, %v318
      %352 = vst.msk [vmem:[#allocation2 + $0x8] sm:$0xff] %vm350, %v319
      %353 = vst.msk [vmem:[#allocation2 + $0x10] sm:$0xff] %vm350, %v320
      %354 = vst.msk [vmem:[#allocation2 + $0x18] sm:$0xff] %vm350, %v321
      %355 = vst.msk [vmem:[#allocation2 + $0x20] sm:$0xff] %vm350, %v322
      %356 = vst.msk [vmem:[#allocation2 + $0x28] sm:$0xff] %vm350, %v323
      %357 = vst.msk [vmem:[#allocation2 + $0x30] sm:$0xff] %vm350, %v324
      %358 = vst.msk [vmem:[#allocation2 + $0x38] sm:$0xff] %vm350, %v325
      %359 = vst.msk [vmem:[#allocation2 + $0x40] sm:$0xff] %vm350, %v326
      %360 = vst.msk [vmem:[#allocation2 + $0x48] sm:$0xff] %vm350, %v327
      %361 = vst.msk [vmem:[#allocation2 + $0x50] sm:$0xff] %vm350, %v328
      %362 = vst.msk [vmem:[#allocation2 + $0x58] sm:$0xff] %vm350, %v329
      %363 = vst.msk [vmem:[#allocation2 + $0x60] sm:$0xff] %vm350, %v330
      %364 = vst.msk [vmem:[#allocation2 + $0x68] sm:$0xff] %vm350, %v331
      %365 = vst.msk [vmem:[#allocation2 + $0x70] sm:$0xff] %vm350, %v332
      %366 = vst.msk [vmem:[#allocation2 + $0x78] sm:$0xff] %vm350, %v333
      %367 = vst.msk [vmem:[#allocation2 + $0x80] sm:$0xff] %vm350, %v334
      %368 = vst.msk [vmem:[#allocation2 + $0x88] sm:$0xff] %vm350, %v335
      %369 = vst.msk [vmem:[#allocation2 + $0x90] sm:$0xff] %vm350, %v336
      %370 = vst.msk [vmem:[#allocation2 + $0x98] sm:$0xff] %vm350, %v337
      %371 = vst.msk [vmem:[#allocation2 + $0xa0] sm:$0xff] %vm350, %v338
      %372 = vst.msk [vmem:[#allocation2 + $0xa8] sm:$0xff] %vm350, %v339
      %373 = vst.msk [vmem:[#allocation2 + $0xb0] sm:$0xff] %vm350, %v340
      %374 = vst.msk [vmem:[#allocation2 + $0xb8] sm:$0xff] %vm350, %v341
      %375 = vst.msk [vmem:[#allocation2 + $0xc0] sm:$0xff] %vm350, %v342
      %376 = vst.msk [vmem:[#allocation2 + $0xc8] sm:$0xff] %vm350, %v343
      %377 = vst.msk [vmem:[#allocation2 + $0xd0] sm:$0xff] %vm350, %v344
      %378 = vst.msk [vmem:[#allocation2 + $0xd8] sm:$0xff] %vm350, %v345
      %379 = vst.msk [vmem:[#allocation2 + $0xe0] sm:$0xff] %vm350, %v346
      %380 = vst.msk [vmem:[#allocation2 + $0xe8] sm:$0xff] %vm350, %v347
      %381 = vst.msk [vmem:[#allocation2 + $0xf0] sm:$0xff] %vm350, %v348
      %382 = vst.msk [vmem:[#allocation2 + $0xf8] sm:$0xff] %vm350, %v349
      %s383 = scalar_lea.vmem %s306, 256
      %v384 = vld [vmem:[%s383] sm:$0xff]
      %v385 = vld [vmem:[%s383 + $0x8] sm:$0xff]
      %v386 = vld [vmem:[%s383 + $0x10] sm:$0xff]
      %v387 = vld [vmem:[%s383 + $0x18] sm:$0xff]
      %v388 = vld [vmem:[%s383 + $0x20] sm:$0xff]
      %v389 = vld [vmem:[%s383 + $0x28] sm:$0xff]
      %v390 = vld [vmem:[%s383 + $0x30] sm:$0xff]
      %v391 = vld [vmem:[%s383 + $0x38] sm:$0xff]
      %v392 = vld [vmem:[%s383 + $0x40] sm:$0xff]
      %v393 = vld [vmem:[%s383 + $0x48] sm:$0xff]
      %v394 = vld [vmem:[%s383 + $0x50] sm:$0xff]
      %v395 = vld [vmem:[%s383 + $0x58] sm:$0xff]
      %v396 = vld [vmem:[%s383 + $0x60] sm:$0xff]
      %v397 = vld [vmem:[%s383 + $0x68] sm:$0xff]
      %v398 = vld [vmem:[%s383 + $0x70] sm:$0xff]
      %v399 = vld [vmem:[%s383 + $0x78] sm:$0xff]
      %v400 = vld [vmem:[%s383 + $0x80] sm:$0xff]
      %v401 = vld [vmem:[%s383 + $0x88] sm:$0xff]
      %v402 = vld [vmem:[%s383 + $0x90] sm:$0xff]
      %v403 = vld [vmem:[%s383 + $0x98] sm:$0xff]
      %v404 = vld [vmem:[%s383 + $0xa0] sm:$0xff]
      %v405 = vld [vmem:[%s383 + $0xa8] sm:$0xff]
      %v406 = vld [vmem:[%s383 + $0xb0] sm:$0xff]
      %v407 = vld [vmem:[%s383 + $0xb8] sm:$0xff]
      %v408 = vld [vmem:[%s383 + $0xc0] sm:$0xff]
      %v409 = vld [vmem:[%s383 + $0xc8] sm:$0xff]
      %v410 = vld [vmem:[%s383 + $0xd0] sm:$0xff]
      %v411 = vld [vmem:[%s383 + $0xd8] sm:$0xff]
      %v412 = vld [vmem:[%s383 + $0xe0] sm:$0xff]
      %v413 = vld [vmem:[%s383 + $0xe8] sm:$0xff]
      %v414 = vld [vmem:[%s383 + $0xf0] sm:$0xff]
      %v415 = vld [vmem:[%s383 + $0xf8] sm:$0xff]
      %448 = vrot.lane.b32.xlu0 %v384, 32
      %v449 = vpop.permute.xlu0 %448
      %450 = vrot.lane.b32.xlu0 %v385, 32
      %v451 = vpop.permute.xlu0 %450
      %452 = vrot.lane.b32.xlu0 %v386, 32
      %v453 = vpop.permute.xlu0 %452
      %454 = vrot.lane.b32.xlu0 %v387, 32
      %v455 = vpop.permute.xlu0 %454
      %456 = vrot.lane.b32.xlu0 %v388, 32
      %v457 = vpop.permute.xlu0 %456
      %458 = vrot.lane.b32.xlu0 %v389, 32
      %v459 = vpop.permute.xlu0 %458
      %460 = vrot.lane.b32.xlu0 %v390, 32
      %v461 = vpop.permute.xlu0 %460
      %462 = vrot.lane.b32.xlu0 %v391, 32
      %v463 = vpop.permute.xlu0 %462
      %464 = vrot.lane.b32.xlu0 %v392, 32
      %v465 = vpop.permute.xlu0 %464
      %466 = vrot.lane.b32.xlu0 %v393, 32
      %v467 = vpop.permute.xlu0 %466
      %468 = vrot.lane.b32.xlu0 %v394, 32
      %v469 = vpop.permute.xlu0 %468
      %470 = vrot.lane.b32.xlu0 %v395, 32
      %v471 = vpop.permute.xlu0 %470
      %472 = vrot.lane.b32.xlu0 %v396, 32
      %v473 = vpop.permute.xlu0 %472
      %474 = vrot.lane.b32.xlu0 %v397, 32
      %v475 = vpop.permute.xlu0 %474
      %476 = vrot.lane.b32.xlu0 %v398, 32
      %v477 = vpop.permute.xlu0 %476
      %478 = vrot.lane.b32.xlu0 %v399, 32
      %v479 = vpop.permute.xlu0 %478
      %480 = vrot.lane.b32.xlu0 %v400, 32
      %v481 = vpop.permute.xlu0 %480
      %482 = vrot.lane.b32.xlu0 %v401, 32
      %v483 = vpop.permute.xlu0 %482
      %484 = vrot.lane.b32.xlu0 %v402, 32
      %v485 = vpop.permute.xlu0 %484
      %486 = vrot.lane.b32.xlu0 %v403, 32
      %v487 = vpop.permute.xlu0 %486
      %488 = vrot.lane.b32.xlu0 %v404, 32
      %v489 = vpop.permute.xlu0 %488
      %490 = vrot.lane.b32.xlu0 %v405, 32
      %v491 = vpop.permute.xlu0 %490
      %492 = vrot.lane.b32.xlu0 %v406, 32
      %v493 = vpop.permute.xlu0 %492
      %494 = vrot.lane.b32.xlu0 %v407, 32
      %v495 = vpop.permute.xlu0 %494
      %496 = vrot.lane.b32.xlu0 %v408, 32
      %v497 = vpop.permute.xlu0 %496
      %498 = vrot.lane.b32.xlu0 %v409, 32
      %v499 = vpop.permute.xlu0 %498
      %500 = vrot.lane.b32.xlu0 %v410, 32
      %v501 = vpop.permute.xlu0 %500
      %502 = vrot.lane.b32.xlu0 %v411, 32
      %v503 = vpop.permute.xlu0 %502
      %504 = vrot.lane.b32.xlu0 %v412, 32
      %v505 = vpop.permute.xlu0 %504
      %506 = vrot.lane.b32.xlu0 %v413, 32
      %v507 = vpop.permute.xlu0 %506
      %508 = vrot.lane.b32.xlu0 %v414, 32
      %v509 = vpop.permute.xlu0 %508
      %510 = vrot.lane.b32.xlu0 %v415, 32
      %v511 = vpop.permute.xlu0 %510
      %vm544 = vcmask 523520
      %545 = vst.msk [vmem:[#allocation2] sm:$0xff] %vm544, %v449
      %546 = vst.msk [vmem:[#allocation2 + $0x8] sm:$0xff] %vm544, %v451
      %547 = vst.msk [vmem:[#allocation2 + $0x10] sm:$0xff] %vm544, %v453
      %548 = vst.msk [vmem:[#allocation2 + $0x18] sm:$0xff] %vm544, %v455
      %549 = vst.msk [vmem:[#allocation2 + $0x20] sm:$0xff] %vm544, %v457
      %550 = vst.msk [vmem:[#allocation2 + $0x28] sm:$0xff] %vm544, %v459
      %551 = vst.msk [vmem:[#allocation2 + $0x30] sm:$0xff] %vm544, %v461
      %552 = vst.msk [vmem:[#allocation2 + $0x38] sm:$0xff] %vm544, %v463
      %553 = vst.msk [vmem:[#allocation2 + $0x40] sm:$0xff] %vm544, %v465
      %554 = vst.msk [vmem:[#allocation2 + $0x48] sm:$0xff] %vm544, %v467
      %555 = vst.msk [vmem:[#allocation2 + $0x50] sm:$0xff] %vm544, %v469
      %556 = vst.msk [vmem:[#allocation2 + $0x58] sm:$0xff] %vm544, %v471
      %557 = vst.msk [vmem:[#allocation2 + $0x60] sm:$0xff] %vm544, %v473
      %558 = vst.msk [vmem:[#allocation2 + $0x68] sm:$0xff] %vm544, %v475
      %559 = vst.msk [vmem:[#allocation2 + $0x70] sm:$0xff] %vm544, %v477
      %560 = vst.msk [vmem:[#allocation2 + $0x78] sm:$0xff] %vm544, %v479
      %561 = vst.msk [vmem:[#allocation2 + $0x80] sm:$0xff] %vm544, %v481
      %562 = vst.msk [vmem:[#allocation2 + $0x88] sm:$0xff] %vm544, %v483
      %563 = vst.msk [vmem:[#allocation2 + $0x90] sm:$0xff] %vm544, %v485
      %564 = vst.msk [vmem:[#allocation2 + $0x98] sm:$0xff] %vm544, %v487
      %565 = vst.msk [vmem:[#allocation2 + $0xa0] sm:$0xff] %vm544, %v489
      %566 = vst.msk [vmem:[#allocation2 + $0xa8] sm:$0xff] %vm544, %v491
      %567 = vst.msk [vmem:[#allocation2 + $0xb0] sm:$0xff] %vm544, %v493
      %568 = vst.msk [vmem:[#allocation2 + $0xb8] sm:$0xff] %vm544, %v495
      %569 = vst.msk [vmem:[#allocation2 + $0xc0] sm:$0xff] %vm544, %v497
      %570 = vst.msk [vmem:[#allocation2 + $0xc8] sm:$0xff] %vm544, %v499
      %571 = vst.msk [vmem:[#allocation2 + $0xd0] sm:$0xff] %vm544, %v501
      %572 = vst.msk [vmem:[#allocation2 + $0xd8] sm:$0xff] %vm544, %v503
      %573 = vst.msk [vmem:[#allocation2 + $0xe0] sm:$0xff] %vm544, %v505
      %574 = vst.msk [vmem:[#allocation2 + $0xe8] sm:$0xff] %vm544, %v507
      %575 = vst.msk [vmem:[#allocation2 + $0xf0] sm:$0xff] %vm544, %v509
      %576 = vst.msk [vmem:[#allocation2 + $0xf8] sm:$0xff] %vm544, %v511
      %s577 = scalar_lea.vmem %s306, 512
      %v578 = vld [vmem:[%s577] sm:$0xff]
      %v579 = vld [vmem:[%s577 + $0x8] sm:$0xff]
      %v580 = vld [vmem:[%s577 + $0x10] sm:$0xff]
      %v581 = vld [vmem:[%s577 + $0x18] sm:$0xff]
      %v582 = vld [vmem:[%s577 + $0x20] sm:$0xff]
      %v583 = vld [vmem:[%s577 + $0x28] sm:$0xff]
      %v584 = vld [vmem:[%s577 + $0x30] sm:$0xff]
      %v585 = vld [vmem:[%s577 + $0x38] sm:$0xff]
      %v586 = vld [vmem:[%s577 + $0x40] sm:$0xff]
      %v587 = vld [vmem:[%s577 + $0x48] sm:$0xff]
      %v588 = vld [vmem:[%s577 + $0x50] sm:$0xff]
      %v589 = vld [vmem:[%s577 + $0x58] sm:$0xff]
      %v590 = vld [vmem:[%s577 + $0x60] sm:$0xff]
      %v591 = vld [vmem:[%s577 + $0x68] sm:$0xff]
      %v592 = vld [vmem:[%s577 + $0x70] sm:$0xff]
      %v593 = vld [vmem:[%s577 + $0x78] sm:$0xff]
      %v594 = vld [vmem:[%s577 + $0x80] sm:$0xff]
      %v595 = vld [vmem:[%s577 + $0x88] sm:$0xff]
      %v596 = vld [vmem:[%s577 + $0x90] sm:$0xff]
      %v597 = vld [vmem:[%s577 + $0x98] sm:$0xff]
      %v598 = vld [vmem:[%s577 + $0xa0] sm:$0xff]
      %v599 = vld [vmem:[%s577 + $0xa8] sm:$0xff]
      %v600 = vld [vmem:[%s577 + $0xb0] sm:$0xff]
      %v601 = vld [vmem:[%s577 + $0xb8] sm:$0xff]
      %v602 = vld [vmem:[%s577 + $0xc0] sm:$0xff]
      %v603 = vld [vmem:[%s577 + $0xc8] sm:$0xff]
      %v604 = vld [vmem:[%s577 + $0xd0] sm:$0xff]
      %v605 = vld [vmem:[%s577 + $0xd8] sm:$0xff]
      %v606 = vld [vmem:[%s577 + $0xe0] sm:$0xff]
      %v607 = vld [vmem:[%s577 + $0xe8] sm:$0xff]
      %v608 = vld [vmem:[%s577 + $0xf0] sm:$0xff]
      %v609 = vld [vmem:[%s577 + $0xf8] sm:$0xff]
      %642 = vrot.lane.b32.xlu0 %v578, 64
      %v643 = vpop.permute.xlu0 %642
      %644 = vrot.lane.b32.xlu0 %v579, 64
      %v645 = vpop.permute.xlu0 %644
      %646 = vrot.lane.b32.xlu0 %v580, 64
      %v647 = vpop.permute.xlu0 %646
      %648 = vrot.lane.b32.xlu0 %v581, 64
      %v649 = vpop.permute.xlu0 %648
      %650 = vrot.lane.b32.xlu0 %v582, 64
      %v651 = vpop.permute.xlu0 %650
      %652 = vrot.lane.b32.xlu0 %v583, 64
      %v653 = vpop.permute.xlu0 %652
      %654 = vrot.lane.b32.xlu0 %v584, 64
      %v655 = vpop.permute.xlu0 %654
      %656 = vrot.lane.b32.xlu0 %v585, 64
      %v657 = vpop.permute.xlu0 %656
      %658 = vrot.lane.b32.xlu0 %v586, 64
      %v659 = vpop.permute.xlu0 %658
      %660 = vrot.lane.b32.xlu0 %v587, 64
      %v661 = vpop.permute.xlu0 %660
      %662 = vrot.lane.b32.xlu0 %v588, 64
      %v663 = vpop.permute.xlu0 %662
      %664 = vrot.lane.b32.xlu0 %v589, 64
      %v665 = vpop.permute.xlu0 %664
      %666 = vrot.lane.b32.xlu0 %v590, 64
      %v667 = vpop.permute.xlu0 %666
      %668 = vrot.lane.b32.xlu0 %v591, 64
      %v669 = vpop.permute.xlu0 %668
      %670 = vrot.lane.b32.xlu0 %v592, 64
      %v671 = vpop.permute.xlu0 %670
      %672 = vrot.lane.b32.xlu0 %v593, 64
      %v673 = vpop.permute.xlu0 %672
      %674 = vrot.lane.b32.xlu0 %v594, 64
      %v675 = vpop.permute.xlu0 %674
      %676 = vrot.lane.b32.xlu0 %v595, 64
      %v677 = vpop.permute.xlu0 %676
      %678 = vrot.lane.b32.xlu0 %v596, 64
      %v679 = vpop.permute.xlu0 %678
      %680 = vrot.lane.b32.xlu0 %v597, 64
      %v681 = vpop.permute.xlu0 %680
      %682 = vrot.lane.b32.xlu0 %v598, 64
      %v683 = vpop.permute.xlu0 %682
      %684 = vrot.lane.b32.xlu0 %v599, 64
      %v685 = vpop.permute.xlu0 %684
      %686 = vrot.lane.b32.xlu0 %v600, 64
      %v687 = vpop.permute.xlu0 %686
      %688 = vrot.lane.b32.xlu0 %v601, 64
      %v689 = vpop.permute.xlu0 %688
      %690 = vrot.lane.b32.xlu0 %v602, 64
      %v691 = vpop.permute.xlu0 %690
      %692 = vrot.lane.b32.xlu0 %v603, 64
      %v693 = vpop.permute.xlu0 %692
      %694 = vrot.lane.b32.xlu0 %v604, 64
      %v695 = vpop.permute.xlu0 %694
      %696 = vrot.lane.b32.xlu0 %v605, 64
      %v697 = vpop.permute.xlu0 %696
      %698 = vrot.lane.b32.xlu0 %v606, 64
      %v699 = vpop.permute.xlu0 %698
      %700 = vrot.lane.b32.xlu0 %v607, 64
      %v701 = vpop.permute.xlu0 %700
      %702 = vrot.lane.b32.xlu0 %v608, 64
      %v703 = vpop.permute.xlu0 %702
      %704 = vrot.lane.b32.xlu0 %v609, 64
      %v705 = vpop.permute.xlu0 %704
      %vm738 = vcmask 785920
      %739 = vst.msk [vmem:[#allocation2] sm:$0xff] %vm738, %v643
      %740 = vst.msk [vmem:[#allocation2 + $0x8] sm:$0xff] %vm738, %v645
      %741 = vst.msk [vmem:[#allocation2 + $0x10] sm:$0xff] %vm738, %v647
      %742 = vst.msk [vmem:[#allocation2 + $0x18] sm:$0xff] %vm738, %v649
      %743 = vst.msk [vmem:[#allocation2 + $0x20] sm:$0xff] %vm738, %v651
      %744 = vst.msk [vmem:[#allocation2 + $0x28] sm:$0xff] %vm738, %v653
      %745 = vst.msk [vmem:[#allocation2 + $0x30] sm:$0xff] %vm738, %v655
      %746 = vst.msk [vmem:[#allocation2 + $0x38] sm:$0xff] %vm738, %v657
      %747 = vst.msk [vmem:[#allocation2 + $0x40] sm:$0xff] %vm738, %v659
      %748 = vst.msk [vmem:[#allocation2 + $0x48] sm:$0xff] %vm738, %v661
      %749 = vst.msk [vmem:[#allocation2 + $0x50] sm:$0xff] %vm738, %v663
      %750 = vst.msk [vmem:[#allocation2 + $0x58] sm:$0xff] %vm738, %v665
      %751 = vst.msk [vmem:[#allocation2 + $0x60] sm:$0xff] %vm738, %v667
      %752 = vst.msk [vmem:[#allocation2 + $0x68] sm:$0xff] %vm738, %v669
      %753 = vst.msk [vmem:[#allocation2 + $0x70] sm:$0xff] %vm738, %v671
      %754 = vst.msk [vmem:[#allocation2 + $0x78] sm:$0xff] %vm738, %v673
      %755 = vst.msk [vmem:[#allocation2 + $0x80] sm:$0xff] %vm738, %v675
      %756 = vst.msk [vmem:[#allocation2 + $0x88] sm:$0xff] %vm738, %v677
      %757 = vst.msk [vmem:[#allocation2 + $0x90] sm:$0xff] %vm738, %v679
      %758 = vst.msk [vmem:[#allocation2 + $0x98] sm:$0xff] %vm738, %v681
      %759 = vst.msk [vmem:[#allocation2 + $0xa0] sm:$0xff] %vm738, %v683
      %760 = vst.msk [vmem:[#allocation2 + $0xa8] sm:$0xff] %vm738, %v685
      %761 = vst.msk [vmem:[#allocation2 + $0xb0] sm:$0xff] %vm738, %v687
      %762 = vst.msk [vmem:[#allocation2 + $0xb8] sm:$0xff] %vm738, %v689
      %763 = vst.msk [vmem:[#allocation2 + $0xc0] sm:$0xff] %vm738, %v691
      %764 = vst.msk [vmem:[#allocation2 + $0xc8] sm:$0xff] %vm738, %v693
      %765 = vst.msk [vmem:[#allocation2 + $0xd0] sm:$0xff] %vm738, %v695
      %766 = vst.msk [vmem:[#allocation2 + $0xd8] sm:$0xff] %vm738, %v697
      %767 = vst.msk [vmem:[#allocation2 + $0xe0] sm:$0xff] %vm738, %v699
      %768 = vst.msk [vmem:[#allocation2 + $0xe8] sm:$0xff] %vm738, %v701
      %769 = vst.msk [vmem:[#allocation2 + $0xf0] sm:$0xff] %vm738, %v703
      %770 = vst.msk [vmem:[#allocation2 + $0xf8] sm:$0xff] %vm738, %v705
      %v771 = vld [vmem:[#allocation2] sm:$0xff]
      %v772 = vld [vmem:[#allocation2 + $0x8] sm:$0xff]
      %v773 = vld [vmem:[#allocation2 + $0x10] sm:$0xff]
      %v774 = vld [vmem:[#allocation2 + $0x18] sm:$0xff]
      %v775 = vld [vmem:[#allocation2 + $0x20] sm:$0xff]
      %v776 = vld [vmem:[#allocation2 + $0x28] sm:$0xff]
      %v777 = vld [vmem:[#allocation2 + $0x30] sm:$0xff]
      %v778 = vld [vmem:[#allocation2 + $0x38] sm:$0xff]
      %v779 = vld [vmem:[#allocation2 + $0x40] sm:$0xff]
      %v780 = vld [vmem:[#allocation2 + $0x48] sm:$0xff]
      %v781 = vld [vmem:[#allocation2 + $0x50] sm:$0xff]
      %v782 = vld [vmem:[#allocation2 + $0x58] sm:$0xff]
      %v783 = vld [vmem:[#allocation2 + $0x60] sm:$0xff]
      %v784 = vld [vmem:[#allocation2 + $0x68] sm:$0xff]
      %v785 = vld [vmem:[#allocation2 + $0x70] sm:$0xff]
      %v786 = vld [vmem:[#allocation2 + $0x78] sm:$0xff]
      %v787 = vld [vmem:[#allocation2 + $0x80] sm:$0xff]
      %v788 = vld [vmem:[#allocation2 + $0x88] sm:$0xff]
      %v789 = vld [vmem:[#allocation2 + $0x90] sm:$0xff]
      %v790 = vld [vmem:[#allocation2 + $0x98] sm:$0xff]
      %v791 = vld [vmem:[#allocation2 + $0xa0] sm:$0xff]
      %v792 = vld [vmem:[#allocation2 + $0xa8] sm:$0xff]
      %v793 = vld [vmem:[#allocation2 + $0xb0] sm:$0xff]
      %v794 = vld [vmem:[#allocation2 + $0xb8] sm:$0xff]
      %v795 = vld [vmem:[#allocation2 + $0xc0] sm:$0xff]
      %v796 = vld [vmem:[#allocation2 + $0xc8] sm:$0xff]
      %v797 = vld [vmem:[#allocation2 + $0xd0] sm:$0xff]
      %v798 = vld [vmem:[#allocation2 + $0xd8] sm:$0xff]
      %v799 = vld [vmem:[#allocation2 + $0xe0] sm:$0xff]
      %v800 = vld [vmem:[#allocation2 + $0xe8] sm:$0xff]
      %v801 = vld [vmem:[#allocation2 + $0xf0] sm:$0xff]
      %v802 = vld [vmem:[#allocation2 + $0xf8] sm:$0xff]
      %v803 = vld [vmem:[%s1] sm:$0xff]
      %v804 = vld [vmem:[%s1 + $0x8] sm:$0xff]
      %v805 = vld [vmem:[%s1 + $0x10] sm:$0xff]
      %v806 = vld [vmem:[%s1 + $0x18] sm:$0xff]
      %v807 = vld [vmem:[%s1 + $0x20] sm:$0xff]
      %v808 = vld [vmem:[%s1 + $0x28] sm:$0xff]
      %v809 = vld [vmem:[%s1 + $0x30] sm:$0xff]
      %v810 = vld [vmem:[%s1 + $0x38] sm:$0xff]
      %v811 = vld [vmem:[%s1 + $0x40] sm:$0xff]
      %v812 = vld [vmem:[%s1 + $0x48] sm:$0xff]
      %v813 = vld [vmem:[%s1 + $0x50] sm:$0xff]
      %v814 = vld [vmem:[%s1 + $0x58] sm:$0xff]
      %v815 = vld [vmem:[%s2] sm:$0x1]
      %v817 = vlaneseq
      %v818 = vshrl.u32 %v817, 7
      %v819 = vsub.s32 0, %v818
      %v820 = vrot.slane %v815, %v819
      %vm822 = vcmask 785408
      %v824 = vsel %vm822, %v771, 0
      %v827 = vsel %vm822, %v772, 0
      %v830 = vsel %vm822, %v773, 0
      %v833 = vsel %vm822, %v774, 0
      %v836 = vsel %vm822, %v775, 0
      %v839 = vsel %vm822, %v776, 0
      %v842 = vsel %vm822, %v777, 0
      %v845 = vsel %vm822, %v778, 0
      %v848 = vsel %vm822, %v779, 0
      %v851 = vsel %vm822, %v780, 0
      %v854 = vsel %vm822, %v781, 0
      %v857 = vsel %vm822, %v782, 0
      %v860 = vsel %vm822, %v783, 0
      %v863 = vsel %vm822, %v784, 0
      %v866 = vsel %vm822, %v785, 0
      %v869 = vsel %vm822, %v786, 0
      %v872 = vsel %vm822, %v787, 0
      %v875 = vsel %vm822, %v788, 0
      %v878 = vsel %vm822, %v789, 0
      %v881 = vsel %vm822, %v790, 0
      %v884 = vsel %vm822, %v791, 0
      %v887 = vsel %vm822, %v792, 0
      %v890 = vsel %vm822, %v793, 0
      %v893 = vsel %vm822, %v794, 0
      %v896 = vsel %vm822, %v795, 0
      %v899 = vsel %vm822, %v796, 0
      %v902 = vsel %vm822, %v797, 0
      %v905 = vsel %vm822, %v798, 0
      %v908 = vsel %vm822, %v799, 0
      %v911 = vsel %vm822, %v800, 0
      %v914 = vsel %vm822, %v801, 0
      %v917 = vsel %vm822, %v802, 0
      %919 = vmatprep.subr.mxu0 0.0
      %920 = vmatpush1.msra.mxu0 %v803
      %921 = vmatprep.subr.mxu0 0.0
      %922 = vmatpush1.msra.mxu0 %v804
      %923 = vmatprep.subr.mxu0 0.0
      %924 = vmatpush1.msra.mxu0 %v805
      %925 = vmatprep.subr.mxu0 0.0
      %926 = vmatpush1.msra.mxu0 %v806
      %927 = vmatprep.subr.mxu0 0.0
      %928 = vmatpush1.msra.mxu0 %v807
      %929 = vmatprep.subr.mxu0 0.0
      %930 = vmatpush1.msra.mxu0 %v808
      %931 = vmatprep.subr.mxu0 0.0
      %932 = vmatpush1.msra.mxu0 %v809
      %933 = vmatprep.subr.mxu0 0.0
      %934 = vmatpush1.msra.mxu0 %v810
      %935 = vmatprep.subr.mxu0 0.0
      %936 = vmatpush1.msra.mxu0 %v811
      %937 = vmatprep.subr.mxu0 0.0
      %938 = vmatpush1.msra.mxu0 %v812
      %939 = vmatprep.subr.mxu0 0.0
      %940 = vmatpush1.msra.mxu0 %v813
      %941 = vmatprep.subr.mxu0 0.0
      %942 = vmatpush1.msra.mxu0 %v814
      %943 = vmatprep.subr.mxu0 0.0
      %944 = vmatpush1.msra.mxu0 0.0
      %945 = vmatprep.subr.mxu0 0.0
      %946 = vmatpush1.msra.mxu0 0.0
      %947 = vmatprep.subr.mxu0 0.0
      %948 = vmatpush1.msra.mxu0 0.0
      %949 = vmatprep.subr.mxu0 0.0
      %950 = vmatpush1.msra.mxu0 0.0
      %951 = vmatprep.subr.mxu0 0.0
      %952 = vmatpush1.msra.mxu0 0.0
      %953 = vmatprep.subr.mxu0 0.0
      %954 = vmatpush1.msra.mxu0 0.0
      %955 = vmatprep.subr.mxu0 0.0
      %956 = vmatpush1.msra.mxu0 0.0
      %957 = vmatprep.subr.mxu0 0.0
      %958 = vmatpush1.msra.mxu0 0.0
      %959 = vmatprep.subr.mxu0 0.0
      %960 = vmatpush1.msra.mxu0 0.0
      %961 = vmatprep.subr.mxu0 0.0
      %962 = vmatpush1.msra.mxu0 0.0
      %963 = vmatprep.subr.mxu0 0.0
      %964 = vmatpush1.msra.mxu0 0.0
      %965 = vmatprep.subr.mxu0 0.0
      %966 = vmatpush1.msra.mxu0 0.0
      %967 = vmatprep.subr.mxu0 0.0
      %968 = vmatpush1.msra.mxu0 0.0
      %969 = vmatprep.subr.mxu0 0.0
      %970 = vmatpush1.msra.mxu0 0.0
      %971 = vmatprep.subr.mxu0 0.0
      %972 = vmatpush1.msra.mxu0 0.0
      %973 = vmatprep.subr.mxu0 0.0
      %974 = vmatpush1.msra.mxu0 0.0
      %975 = vmatprep.subr.mxu0 0.0
      %976 = vmatpush1.msra.mxu0 0.0
      %977 = vmatprep.subr.mxu0 0.0
      %978 = vmatpush1.msra.mxu0 0.0
      %979 = vmatprep.subr.mxu0 0.0
      %980 = vmatpush1.msra.mxu0 0.0
      %981 = vmatprep.subr.mxu0 0.0
      %982 = vmatpush1.msra.mxu0 0.0
      %983 = vmatprep.mubr.f32.mxu0 0.0
      %984 = vmatmul.mubr.f32.gmra.mrb[0].mxu0 %v824
      %v985 = vpop.f32.mrb[0].mxu0
      %v986 = vadd.f32 %v820, %v985
      %v987 = vpop.f32.mrb[0].mxu0
      %988 = vmatprep.mubr.f32.mxu0 0.0
      %989 = vmatmul.mubr.f32.gmra.mrb[0].mxu0 %v827
      %v990 = vpop.f32.mrb[0].mxu0
      %v991 = vadd.f32 %v820, %v990
      %v992 = vpop.f32.mrb[0].mxu0
      %993 = vmatprep.mubr.f32.mxu0 0.0
      %994 = vmatmul.mubr.f32.gmra.mrb[0].mxu0 %v830
      %v995 = vpop.f32.mrb[0].mxu0
      %v996 = vadd.f32 %v820, %v995
      %v997 = vpop.f32.mrb[0].mxu0
      %998 = vmatprep.mubr.f32.mxu0 0.0
      %999 = vmatmul.mubr.f32.gmra.mrb[0].mxu0 %v833
      %v1000 = vpop.f32.mrb[0].mxu0
      %v1001 = vadd.f32 %v820, %v1000
      %v1002 = vpop.f32.mrb[0].mxu0
      %1003 = vmatprep.mubr.f32.mxu0 0.0
      %1004 = vmatmul.mubr.f32.gmra.mrb[0].mxu0 %v836
      %v1005 = vpop.f32.mrb[0].mxu0
      %v1006 = vadd.f32 %v820, %v1005
      %v1007 = vpop.f32.mrb[0].mxu0
      %1008 = vmatprep.mubr.f32.mxu0 0.0
      %1009 = vmatmul.mubr.f32.gmra.mrb[0].mxu0 %v839
      %v1010 = vpop.f32.mrb[0].mxu0
      %v1011 = vadd.f32 %v820, %v1010
      %v1012 = vpop.f32.mrb[0].mxu0
      %1013 = vmatprep.mubr.f32.mxu0 0.0
      %1014 = vmatmul.mubr.f32.gmra.mrb[0].mxu0 %v842
      %v1015 = vpop.f32.mrb[0].mxu0
      %v1016 = vadd.f32 %v820, %v1015
      %v1017 = vpop.f32.mrb[0].mxu0
      %1018 = vmatprep.mubr.f32.mxu0 0.0
      %1019 = vmatmul.mubr.f32.gmra.mrb[0].mxu0 %v845
      %v1020 = vpop.f32.mrb[0].mxu0
      %v1021 = vadd.f32 %v820, %v1020
      %v1022 = vpop.f32.mrb[0].mxu0
      %1023 = vmatprep.mubr.f32.mxu0 0.0
      %1024 = vmatmul.mubr.f32.gmra.mrb[0].mxu0 %v848
      %v1025 = vpop.f32.mrb[0].mxu0
      %v1026 = vadd.f32 %v820, %v1025
      %v1027 = vpop.f32.mrb[0].mxu0
      %1028 = vmatprep.mubr.f32.mxu0 0.0
      %1029 = vmatmul.mubr.f32.gmra.mrb[0].mxu0 %v851
      %v1030 = vpop.f32.mrb[0].mxu0
      %v1031 = vadd.f32 %v820, %v1030
      %v1032 = vpop.f32.mrb[0].mxu0
      %1033 = vmatprep.mubr.f32.mxu0 0.0
      %1034 = vmatmul.mubr.f32.gmra.mrb[0].mxu0 %v854
      %v1035 = vpop.f32.mrb[0].mxu0
      %v1036 = vadd.f32 %v820, %v1035
      %v1037 = vpop.f32.mrb[0].mxu0
      %1038 = vmatprep.mubr.f32.mxu0 0.0
      %1039 = vmatmul.mubr.f32.gmra.mrb[0].mxu0 %v857
      %v1040 = vpop.f32.mrb[0].mxu0
      %v1041 = vadd.f32 %v820, %v1040
      %v1042 = vpop.f32.mrb[0].mxu0
      %1043 = vmatprep.mubr.f32.mxu0 0.0
      %1044 = vmatmul.mubr.f32.gmra.mrb[0].mxu0 %v860
      %v1045 = vpop.f32.mrb[0].mxu0
      %v1046 = vadd.f32 %v820, %v1045
      %v1047 = vpop.f32.mrb[0].mxu0
      %1048 = vmatprep.mubr.f32.mxu0 0.0
      %1049 = vmatmul.mubr.f32.gmra.mrb[0].mxu0 %v863
      %v1050 = vpop.f32.mrb[0].mxu0
      %v1051 = vadd.f32 %v820, %v1050
      %v1052 = vpop.f32.mrb[0].mxu0
      %1053 = vmatprep.mubr.f32.mxu0 0.0
      %1054 = vmatmul.mubr.f32.gmra.mrb[0].mxu0 %v866
      %v1055 = vpop.f32.mrb[0].mxu0
      %v1056 = vadd.f32 %v820, %v1055
      %v1057 = vpop.f32.mrb[0].mxu0
      %1058 = vmatprep.mubr.f32.mxu0 0.0
      %1059 = vmatmul.mubr.f32.gmra.mrb[0].mxu0 %v869
      %v1060 = vpop.f32.mrb[0].mxu0
      %v1061 = vadd.f32 %v820, %v1060
      %v1062 = vpop.f32.mrb[0].mxu0
      %1063 = vmatprep.mubr.f32.mxu0 0.0
      %1064 = vmatmul.mubr.f32.gmra.mrb[0].mxu0 %v872
      %v1065 = vpop.f32.mrb[0].mxu0
      %v1066 = vadd.f32 %v820, %v1065
      %v1067 = vpop.f32.mrb[0].mxu0
      %1068 = vmatprep.mubr.f32.mxu0 0.0
      %1069 = vmatmul.mubr.f32.gmra.mrb[0].mxu0 %v875
      %v1070 = vpop.f32.mrb[0].mxu0
      %v1071 = vadd.f32 %v820, %v1070
      %v1072 = vpop.f32.mrb[0].mxu0
      %1073 = vmatprep.mubr.f32.mxu0 0.0
      %1074 = vmatmul.mubr.f32.gmra.mrb[0].mxu0 %v878
      %v1075 = vpop.f32.mrb[0].mxu0
      %v1076 = vadd.f32 %v820, %v1075
      %v1077 = vpop.f32.mrb[0].mxu0
      %1078 = vmatprep.mubr.f32.mxu0 0.0
      %1079 = vmatmul.mubr.f32.gmra.mrb[0].mxu0 %v881
      %v1080 = vpop.f32.mrb[0].mxu0
      %v1081 = vadd.f32 %v820, %v1080
      %v1082 = vpop.f32.mrb[0].mxu0
      %1083 = vmatprep.mubr.f32.mxu0 0.0
      %1084 = vmatmul.mubr.f32.gmra.mrb[0].mxu0 %v884
      %v1085 = vpop.f32.mrb[0].mxu0
      %v1086 = vadd.f32 %v820, %v1085
      %v1087 = vpop.f32.mrb[0].mxu0
      %1088 = vmatprep.mubr.f32.mxu0 0.0
      %1089 = vmatmul.mubr.f32.gmra.mrb[0].mxu0 %v887
      %v1090 = vpop.f32.mrb[0].mxu0
      %v1091 = vadd.f32 %v820, %v1090
      %v1092 = vpop.f32.mrb[0].mxu0
      %1093 = vmatprep.mubr.f32.mxu0 0.0
      %1094 = vmatmul.mubr.f32.gmra.mrb[0].mxu0 %v890
      %v1095 = vpop.f32.mrb[0].mxu0
      %v1096 = vadd.f32 %v820, %v1095
      %v1097 = vpop.f32.mrb[0].mxu0
      %1098 = vmatprep.mubr.f32.mxu0 0.0
      %1099 = vmatmul.mubr.f32.gmra.mrb[0].mxu0 %v893
      %v1100 = vpop.f32.mrb[0].mxu0
      %v1101 = vadd.f32 %v820, %v1100
      %v1102 = vpop.f32.mrb[0].mxu0
      %1103 = vmatprep.mubr.f32.mxu0 0.0
      %1104 = vmatmul.mubr.f32.gmra.mrb[0].mxu0 %v896
      %v1105 = vpop.f32.mrb[0].mxu0
      %v1106 = vadd.f32 %v820, %v1105
      %v1107 = vpop.f32.mrb[0].mxu0
      %1108 = vmatprep.mubr.f32.mxu0 0.0
      %1109 = vmatmul.mubr.f32.gmra.mrb[0].mxu0 %v899
      %v1110 = vpop.f32.mrb[0].mxu0
      %v1111 = vadd.f32 %v820, %v1110
      %v1112 = vpop.f32.mrb[0].mxu0
      %1113 = vmatprep.mubr.f32.mxu0 0.0
      %1114 = vmatmul.mubr.f32.gmra.mrb[0].mxu0 %v902
      %v1115 = vpop.f32.mrb[0].mxu0
      %v1116 = vadd.f32 %v820, %v1115
      %v1117 = vpop.f32.mrb[0].mxu0
      %1118 = vmatprep.mubr.f32.mxu0 0.0
      %1119 = vmatmul.mubr.f32.gmra.mrb[0].mxu0 %v905
      %v1120 = vpop.f32.mrb[0].mxu0
      %v1121 = vadd.f32 %v820, %v1120
      %v1122 = vpop.f32.mrb[0].mxu0
      %1123 = vmatprep.mubr.f32.mxu0 0.0
      %1124 = vmatmul.mubr.f32.gmra.mrb[0].mxu0 %v908
      %v1125 = vpop.f32.mrb[0].mxu0
      %v1126 = vadd.f32 %v820, %v1125
      %v1127 = vpop.f32.mrb[0].mxu0
      %1128 = vmatprep.mubr.f32.mxu0 0.0
      %1129 = vmatmul.mubr.f32.gmra.mrb[0].mxu0 %v911
      %v1130 = vpop.f32.mrb[0].mxu0
      %v1131 = vadd.f32 %v820, %v1130
      %v1132 = vpop.f32.mrb[0].mxu0
      %1133 = vmatprep.mubr.f32.mxu0 0.0
      %1134 = vmatmul.mubr.f32.gmra.mrb[0].mxu0 %v914
      %v1135 = vpop.f32.mrb[0].mxu0
      %v1136 = vadd.f32 %v820, %v1135
      %v1137 = vpop.f32.mrb[0].mxu0
      %1138 = vmatprep.mubr.f32.mxu0 0.0
      %1139 = vmatmul.mubr.f32.gmra.mrb[0].mxu0 %v917
      %v1140 = vpop.f32.mrb[0].mxu0
      %v1141 = vadd.f32 %v820, %v1140
      %v1142 = vpop.f32.mrb[0].mxu0
      %1143 = vdwg.mxu0
      %v1144 = vmax.f32 %v986, 0.0
      %v1145 = vmax.f32 %v991, 0.0
      %v1146 = vmax.f32 %v996, 0.0
      %v1147 = vmax.f32 %v1001, 0.0
      %v1148 = vmax.f32 %v1006, 0.0
      %v1149 = vmax.f32 %v1011, 0.0
      %v1150 = vmax.f32 %v1016, 0.0
      %v1151 = vmax.f32 %v1021, 0.0
      %v1152 = vmax.f32 %v1026, 0.0
      %v1153 = vmax.f32 %v1031, 0.0
      %v1154 = vmax.f32 %v1036, 0.0
      %v1155 = vmax.f32 %v1041, 0.0
      %v1156 = vmax.f32 %v1046, 0.0
      %v1157 = vmax.f32 %v1051, 0.0
      %v1158 = vmax.f32 %v1056, 0.0
      %v1159 = vmax.f32 %v1061, 0.0
      %v1160 = vmax.f32 %v1066, 0.0
      %v1161 = vmax.f32 %v1071, 0.0
      %v1162 = vmax.f32 %v1076, 0.0
      %v1163 = vmax.f32 %v1081, 0.0
      %v1164 = vmax.f32 %v1086, 0.0
      %v1165 = vmax.f32 %v1091, 0.0
      %v1166 = vmax.f32 %v1096, 0.0
      %v1167 = vmax.f32 %v1101, 0.0
      %v1168 = vmax.f32 %v1106, 0.0
      %v1169 = vmax.f32 %v1111, 0.0
      %v1170 = vmax.f32 %v1116, 0.0
      %v1171 = vmax.f32 %v1121, 0.0
      %v1172 = vmax.f32 %v1126, 0.0
      %v1173 = vmax.f32 %v1131, 0.0
      %v1174 = vmax.f32 %v1136, 0.0
      %v1175 = vmax.f32 %v1141, 0.0
      %v1176 = vld [vmem:[%s3] sm:$0xff]
      %v1177 = vld [vmem:[%s3 + $0x8] sm:$0xff]
      %v1178 = vld [vmem:[%s3 + $0x10] sm:$0xff]
      %v1179 = vld [vmem:[%s3 + $0x18] sm:$0xff]
      %v1180 = vld [vmem:[%s3 + $0x20] sm:$0xff]
      %v1181 = vld [vmem:[%s3 + $0x28] sm:$0xff]
      %v1182 = vld [vmem:[%s3 + $0x30] sm:$0xff]
      %v1183 = vld [vmem:[%s3 + $0x38] sm:$0xff]
      %v1184 = vld [vmem:[%s4] sm:$0x1]
      %v1186 = vlaneseq
      %v1187 = vshrl.u32 %v1186, 7
      %v1188 = vsub.s32 0, %v1187
      %v1189 = vrot.slane %v1184, %v1188
      %vm1191 = vcmask 523264
      %v1193 = vsel %vm1191, %v1144, 0
      %v1196 = vsel %vm1191, %v1145, 0
      %v1199 = vsel %vm1191, %v1146, 0
      %v1202 = vsel %vm1191, %v1147, 0
      %v1205 = vsel %vm1191, %v1148, 0
      %v1208 = vsel %vm1191, %v1149, 0
      %v1211 = vsel %vm1191, %v1150, 0
      %v1214 = vsel %vm1191, %v1151, 0
      %v1217 = vsel %vm1191, %v1152, 0
      %v1220 = vsel %vm1191, %v1153, 0
      %v1223 = vsel %vm1191, %v1154, 0
      %v1226 = vsel %vm1191, %v1155, 0
      %v1229 = vsel %vm1191, %v1156, 0
      %v1232 = vsel %vm1191, %v1157, 0
      %v1235 = vsel %vm1191, %v1158, 0
      %v1238 = vsel %vm1191, %v1159, 0
      %v1241 = vsel %vm1191, %v1160, 0
      %v1244 = vsel %vm1191, %v1161, 0
      %v1247 = vsel %vm1191, %v1162, 0
      %v1250 = vsel %vm1191, %v1163, 0
      %v1253 = vsel %vm1191, %v1164, 0
      %v1256 = vsel %vm1191, %v1165, 0
      %v1259 = vsel %vm1191, %v1166, 0
      %v1262 = vsel %vm1191, %v1167, 0
      %v1265 = vsel %vm1191, %v1168, 0
      %v1268 = vsel %vm1191, %v1169, 0
      %v1271 = vsel %vm1191, %v1170, 0
      %v1274 = vsel %vm1191, %v1171, 0
      %v1277 = vsel %vm1191, %v1172, 0
      %v1280 = vsel %vm1191, %v1173, 0
      %v1283 = vsel %vm1191, %v1174, 0
      %v1286 = vsel %vm1191, %v1175, 0
      %1288 = vmatprep.subr.mxu0 0.0
      %1289 = vmatpush1.msra.mxu0 %v1176
      %1290 = vmatprep.subr.mxu0 0.0
      %1291 = vmatpush1.msra.mxu0 %v1177
      %1292 = vmatprep.subr.mxu0 0.0
      %1293 = vmatpush1.msra.mxu0 %v1178
      %1294 = vmatprep.subr.mxu0 0.0
      %1295 = vmatpush1.msra.mxu0 %v1179
      %1296 = vmatprep.subr.mxu0 0.0
      %1297 = vmatpush1.msra.mxu0 %v1180
      %1298 = vmatprep.subr.mxu0 0.0
      %1299 = vmatpush1.msra.mxu0 %v1181
      %1300 = vmatprep.subr.mxu0 0.0
      %1301 = vmatpush1.msra.mxu0 %v1182
      %1302 = vmatprep.subr.mxu0 0.0
      %1303 = vmatpush1.msra.mxu0 %v1183
      %1304 = vmatprep.subr.mxu0 0.0
      %1305 = vmatpush1.msra.mxu0 0.0
      %1306 = vmatprep.subr.mxu0 0.0
      %1307 = vmatpush1.msra.mxu0 0.0
      %1308 = vmatprep.subr.mxu0 0.0
      %1309 = vmatpush1.msra.mxu0 0.0
      %1310 = vmatprep.subr.mxu0 0.0
      %1311 = vmatpush1.msra.mxu0 0.0
      %1312 = vmatprep.subr.mxu0 0.0
      %1313 = vmatpush1.msra.mxu0 0.0
      %1314 = vmatprep.subr.mxu0 0.0
      %1315 = vmatpush1.msra.mxu0 0.0
      %1316 = vmatprep.subr.mxu0 0.0
      %1317 = vmatpush1.msra.mxu0 0.0
      %1318 = vmatprep.subr.mxu0 0.0
      %1319 = vmatpush1.msra.mxu0 0.0
      %1320 = vmatprep.subr.mxu0 0.0
      %1321 = vmatpush1.msra.mxu0 0.0
      %1322 = vmatprep.subr.mxu0 0.0
      %1323 = vmatpush1.msra.mxu0 0.0
      %1324 = vmatprep.subr.mxu0 0.0
      %1325 = vmatpush1.msra.mxu0 0.0
      %1326 = vmatprep.subr.mxu0 0.0
      %1327 = vmatpush1.msra.mxu0 0.0
      %1328 = vmatprep.subr.mxu0 0.0
      %1329 = vmatpush1.msra.mxu0 0.0
      %1330 = vmatprep.subr.mxu0 0.0
      %1331 = vmatpush1.msra.mxu0 0.0
      %1332 = vmatprep.subr.mxu0 0.0
      %1333 = vmatpush1.msra.mxu0 0.0
      %1334 = vmatprep.subr.mxu0 0.0
      %1335 = vmatpush1.msra.mxu0 0.0
      %1336 = vmatprep.subr.mxu0 0.0
      %1337 = vmatpush1.msra.mxu0 0.0
      %1338 = vmatprep.subr.mxu0 0.0
      %1339 = vmatpush1.msra.mxu0 0.0
      %1340 = vmatprep.subr.mxu0 0.0
      %1341 = vmatpush1.msra.mxu0 0.0
      %1342 = vmatprep.subr.mxu0 0.0
      %1343 = vmatpush1.msra.mxu0 0.0
      %1344 = vmatprep.subr.mxu0 0.0
      %1345 = vmatpush1.msra.mxu0 0.0
      %1346 = vmatprep.subr.mxu0 0.0
      %1347 = vmatpush1.msra.mxu0 0.0
      %1348 = vmatprep.subr.mxu0 0.0
      %1349 = vmatpush1.msra.mxu0 0.0
      %1350 = vmatprep.subr.mxu0 0.0
      %1351 = vmatpush1.msra.mxu0 0.0
      %1352 = vmatprep.mubr.f32.mxu0 0.0
      %1353 = vmatmul.mubr.f32.gmra.mrb[0].mxu0 %v1193
      %v1354 = vpop.f32.mrb[0].mxu0
      %v1355 = vadd.f32 %v1189, %v1354
      %v1356 = vpop.f32.mrb[0].mxu0
      %1357 = vmatprep.mubr.f32.mxu0 0.0
      %1358 = vmatmul.mubr.f32.gmra.mrb[0].mxu0 %v1196
      %v1359 = vpop.f32.mrb[0].mxu0
      %v1360 = vadd.f32 %v1189, %v1359
      %v1361 = vpop.f32.mrb[0].mxu0
      %1362 = vmatprep.mubr.f32.mxu0 0.0
      %1363 = vmatmul.mubr.f32.gmra.mrb[0].mxu0 %v1199
      %v1364 = vpop.f32.mrb[0].mxu0
      %v1365 = vadd.f32 %v1189, %v1364
      %v1366 = vpop.f32.mrb[0].mxu0
      %1367 = vmatprep.mubr.f32.mxu0 0.0
      %1368 = vmatmul.mubr.f32.gmra.mrb[0].mxu0 %v1202
      %v1369 = vpop.f32.mrb[0].mxu0
      %v1370 = vadd.f32 %v1189, %v1369
      %v1371 = vpop.f32.mrb[0].mxu0
      %1372 = vmatprep.mubr.f32.mxu0 0.0
      %1373 = vmatmul.mubr.f32.gmra.mrb[0].mxu0 %v1205
      %v1374 = vpop.f32.mrb[0].mxu0
      %v1375 = vadd.f32 %v1189, %v1374
      %v1376 = vpop.f32.mrb[0].mxu0
      %1377 = vmatprep.mubr.f32.mxu0 0.0
      %1378 = vmatmul.mubr.f32.gmra.mrb[0].mxu0 %v1208
      %v1379 = vpop.f32.mrb[0].mxu0
      %v1380 = vadd.f32 %v1189, %v1379
      %v1381 = vpop.f32.mrb[0].mxu0
      %1382 = vmatprep.mubr.f32.mxu0 0.0
      %1383 = vmatmul.mubr.f32.gmra.mrb[0].mxu0 %v1211
      %v1384 = vpop.f32.mrb[0].mxu0
      %v1385 = vadd.f32 %v1189, %v1384
      %v1386 = vpop.f32.mrb[0].mxu0
      %1387 = vmatprep.mubr.f32.mxu0 0.0
      %1388 = vmatmul.mubr.f32.gmra.mrb[0].mxu0 %v1214
      %v1389 = vpop.f32.mrb[0].mxu0
      %v1390 = vadd.f32 %v1189, %v1389
      %v1391 = vpop.f32.mrb[0].mxu0
      %1392 = vmatprep.mubr.f32.mxu0 0.0
      %1393 = vmatmul.mubr.f32.gmra.mrb[0].mxu0 %v1217
      %v1394 = vpop.f32.mrb[0].mxu0
      %v1395 = vadd.f32 %v1189, %v1394
      %v1396 = vpop.f32.mrb[0].mxu0
      %1397 = vmatprep.mubr.f32.mxu0 0.0
      %1398 = vmatmul.mubr.f32.gmra.mrb[0].mxu0 %v1220
      %v1399 = vpop.f32.mrb[0].mxu0
      %v1400 = vadd.f32 %v1189, %v1399
      %v1401 = vpop.f32.mrb[0].mxu0
      %1402 = vmatprep.mubr.f32.mxu0 0.0
      %1403 = vmatmul.mubr.f32.gmra.mrb[0].mxu0 %v1223
      %v1404 = vpop.f32.mrb[0].mxu0
      %v1405 = vadd.f32 %v1189, %v1404
      %v1406 = vpop.f32.mrb[0].mxu0
      %1407 = vmatprep.mubr.f32.mxu0 0.0
      %1408 = vmatmul.mubr.f32.gmra.mrb[0].mxu0 %v1226
      %v1409 = vpop.f32.mrb[0].mxu0
      %v1410 = vadd.f32 %v1189, %v1409
      %v1411 = vpop.f32.mrb[0].mxu0
      %1412 = vmatprep.mubr.f32.mxu0 0.0
      %1413 = vmatmul.mubr.f32.gmra.mrb[0].mxu0 %v1229
      %v1414 = vpop.f32.mrb[0].mxu0
      %v1415 = vadd.f32 %v1189, %v1414
      %v1416 = vpop.f32.mrb[0].mxu0
      %1417 = vmatprep.mubr.f32.mxu0 0.0
      %1418 = vmatmul.mubr.f32.gmra.mrb[0].mxu0 %v1232
      %v1419 = vpop.f32.mrb[0].mxu0
      %v1420 = vadd.f32 %v1189, %v1419
      %v1421 = vpop.f32.mrb[0].mxu0
      %1422 = vmatprep.mubr.f32.mxu0 0.0
      %1423 = vmatmul.mubr.f32.gmra.mrb[0].mxu0 %v1235
      %v1424 = vpop.f32.mrb[0].mxu0
      %v1425 = vadd.f32 %v1189, %v1424
      %v1426 = vpop.f32.mrb[0].mxu0
      %1427 = vmatprep.mubr.f32.mxu0 0.0
      %1428 = vmatmul.mubr.f32.gmra.mrb[0].mxu0 %v1238
      %v1429 = vpop.f32.mrb[0].mxu0
      %v1430 = vadd.f32 %v1189, %v1429
      %v1431 = vpop.f32.mrb[0].mxu0
      %1432 = vmatprep.mubr.f32.mxu0 0.0
      %1433 = vmatmul.mubr.f32.gmra.mrb[0].mxu0 %v1241
      %v1434 = vpop.f32.mrb[0].mxu0
      %v1435 = vadd.f32 %v1189, %v1434
      %v1436 = vpop.f32.mrb[0].mxu0
      %1437 = vmatprep.mubr.f32.mxu0 0.0
      %1438 = vmatmul.mubr.f32.gmra.mrb[0].mxu0 %v1244
      %v1439 = vpop.f32.mrb[0].mxu0
      %v1440 = vadd.f32 %v1189, %v1439
      %v1441 = vpop.f32.mrb[0].mxu0
      %1442 = vmatprep.mubr.f32.mxu0 0.0
      %1443 = vmatmul.mubr.f32.gmra.mrb[0].mxu0 %v1247
      %v1444 = vpop.f32.mrb[0].mxu0
      %v1445 = vadd.f32 %v1189, %v1444
      %v1446 = vpop.f32.mrb[0].mxu0
      %1447 = vmatprep.mubr.f32.mxu0 0.0
      %1448 = vmatmul.mubr.f32.gmra.mrb[0].mxu0 %v1250
      %v1449 = vpop.f32.mrb[0].mxu0
      %v1450 = vadd.f32 %v1189, %v1449
      %v1451 = vpop.f32.mrb[0].mxu0
      %1452 = vmatprep.mubr.f32.mxu0 0.0
      %1453 = vmatmul.mubr.f32.gmra.mrb[0].mxu0 %v1253
      %v1454 = vpop.f32.mrb[0].mxu0
      %v1455 = vadd.f32 %v1189, %v1454
      %v1456 = vpop.f32.mrb[0].mxu0
      %1457 = vmatprep.mubr.f32.mxu0 0.0
      %1458 = vmatmul.mubr.f32.gmra.mrb[0].mxu0 %v1256
      %v1459 = vpop.f32.mrb[0].mxu0
      %v1460 = vadd.f32 %v1189, %v1459
      %v1461 = vpop.f32.mrb[0].mxu0
      %1462 = vmatprep.mubr.f32.mxu0 0.0
      %1463 = vmatmul.mubr.f32.gmra.mrb[0].mxu0 %v1259
      %v1464 = vpop.f32.mrb[0].mxu0
      %v1465 = vadd.f32 %v1189, %v1464
      %v1466 = vpop.f32.mrb[0].mxu0
      %1467 = vmatprep.mubr.f32.mxu0 0.0
      %1468 = vmatmul.mubr.f32.gmra.mrb[0].mxu0 %v1262
      %v1469 = vpop.f32.mrb[0].mxu0
      %v1470 = vadd.f32 %v1189, %v1469
      %v1471 = vpop.f32.mrb[0].mxu0
      %1472 = vmatprep.mubr.f32.mxu0 0.0
      %1473 = vmatmul.mubr.f32.gmra.mrb[0].mxu0 %v1265
      %v1474 = vpop.f32.mrb[0].mxu0
      %v1475 = vadd.f32 %v1189, %v1474
      %v1476 = vpop.f32.mrb[0].mxu0
      %1477 = vmatprep.mubr.f32.mxu0 0.0
      %1478 = vmatmul.mubr.f32.gmra.mrb[0].mxu0 %v1268
      %v1479 = vpop.f32.mrb[0].mxu0
      %v1480 = vadd.f32 %v1189, %v1479
      %v1481 = vpop.f32.mrb[0].mxu0
      %1482 = vmatprep.mubr.f32.mxu0 0.0
      %1483 = vmatmul.mubr.f32.gmra.mrb[0].mxu0 %v1271
      %v1484 = vpop.f32.mrb[0].mxu0
      %v1485 = vadd.f32 %v1189, %v1484
      %v1486 = vpop.f32.mrb[0].mxu0
      %1487 = vmatprep.mubr.f32.mxu0 0.0
      %1488 = vmatmul.mubr.f32.gmra.mrb[0].mxu0 %v1274
      %v1489 = vpop.f32.mrb[0].mxu0
      %v1490 = vadd.f32 %v1189, %v1489
      %v1491 = vpop.f32.mrb[0].mxu0
      %1492 = vmatprep.mubr.f32.mxu0 0.0
      %1493 = vmatmul.mubr.f32.gmra.mrb[0].mxu0 %v1277
      %v1494 = vpop.f32.mrb[0].mxu0
      %v1495 = vadd.f32 %v1189, %v1494
      %v1496 = vpop.f32.mrb[0].mxu0
      %1497 = vmatprep.mubr.f32.mxu0 0.0
      %1498 = vmatmul.mubr.f32.gmra.mrb[0].mxu0 %v1280
      %v1499 = vpop.f32.mrb[0].mxu0
      %v1500 = vadd.f32 %v1189, %v1499
      %v1501 = vpop.f32.mrb[0].mxu0
      %1502 = vmatprep.mubr.f32.mxu0 0.0
      %1503 = vmatmul.mubr.f32.gmra.mrb[0].mxu0 %v1283
      %v1504 = vpop.f32.mrb[0].mxu0
      %v1505 = vadd.f32 %v1189, %v1504
      %v1506 = vpop.f32.mrb[0].mxu0
      %1507 = vmatprep.mubr.f32.mxu0 0.0
      %1508 = vmatmul.mubr.f32.gmra.mrb[0].mxu0 %v1286
      %v1509 = vpop.f32.mrb[0].mxu0
      %v1510 = vadd.f32 %v1189, %v1509
      %v1511 = vpop.f32.mrb[0].mxu0
      %1512 = vdwg.mxu0
      %v1513 = vmax.f32 %v1355, 0.0
      %v1514 = vmax.f32 %v1360, 0.0
      %v1515 = vmax.f32 %v1365, 0.0
      %v1516 = vmax.f32 %v1370, 0.0
      %v1517 = vmax.f32 %v1375, 0.0
      %v1518 = vmax.f32 %v1380, 0.0
      %v1519 = vmax.f32 %v1385, 0.0
      %v1520 = vmax.f32 %v1390, 0.0
      %v1521 = vmax.f32 %v1395, 0.0
      %v1522 = vmax.f32 %v1400, 0.0
      %v1523 = vmax.f32 %v1405, 0.0
      %v1524 = vmax.f32 %v1410, 0.0
      %v1525 = vmax.f32 %v1415, 0.0
      %v1526 = vmax.f32 %v1420, 0.0
      %v1527 = vmax.f32 %v1425, 0.0
      %v1528 = vmax.f32 %v1430, 0.0
      %v1529 = vmax.f32 %v1435, 0.0
      %v1530 = vmax.f32 %v1440, 0.0
      %v1531 = vmax.f32 %v1445, 0.0
      %v1532 = vmax.f32 %v1450, 0.0
      %v1533 = vmax.f32 %v1455, 0.0
      %v1534 = vmax.f32 %v1460, 0.0
      %v1535 = vmax.f32 %v1465, 0.0
      %v1536 = vmax.f32 %v1470, 0.0
      %v1537 = vmax.f32 %v1475, 0.0
      %v1538 = vmax.f32 %v1480, 0.0
      %v1539 = vmax.f32 %v1485, 0.0
      %v1540 = vmax.f32 %v1490, 0.0
      %v1541 = vmax.f32 %v1495, 0.0
      %v1542 = vmax.f32 %v1500, 0.0
      %v1543 = vmax.f32 %v1505, 0.0
      %v1544 = vmax.f32 %v1510, 0.0
      %s1545 = scalar_lea.vmem %s3, 64
      %v1546 = vld [vmem:[%s1545] sm:$0xff]
      %v1547 = vld [vmem:[%s1545 + $0x8] sm:$0xff]
      %v1548 = vld [vmem:[%s1545 + $0x10] sm:$0xff]
      %v1549 = vld [vmem:[%s1545 + $0x18] sm:$0xff]
      %v1550 = vld [vmem:[%s1545 + $0x20] sm:$0xff]
      %v1551 = vld [vmem:[%s1545 + $0x28] sm:$0xff]
      %v1552 = vld [vmem:[%s1545 + $0x30] sm:$0xff]
      %v1553 = vld [vmem:[%s1545 + $0x38] sm:$0xff]
      %s1554 = scalar_lea.vmem %s4, 1
      %v1555 = vld [vmem:[%s1554] sm:$0x1]
      %v1557 = vlaneseq
      %v1558 = vshrl.u32 %v1557, 7
      %v1559 = vsub.s32 0, %v1558
      %v1560 = vrot.slane %v1555, %v1559
      %v1563 = vsel %vm1191, %v1513, 0
      %v1566 = vsel %vm1191, %v1514, 0
      %v1569 = vsel %vm1191, %v1515, 0
      %v1572 = vsel %vm1191, %v1516, 0
      %v1575 = vsel %vm1191, %v1517, 0
      %v1578 = vsel %vm1191, %v1518, 0
      %v1581 = vsel %vm1191, %v1519, 0
      %v1584 = vsel %vm1191, %v1520, 0
      %v1587 = vsel %vm1191, %v1521, 0
      %v1590 = vsel %vm1191, %v1522, 0
      %v1593 = vsel %vm1191, %v1523, 0
      %v1596 = vsel %vm1191, %v1524, 0
      %v1599 = vsel %vm1191, %v1525, 0
      %v1602 = vsel %vm1191, %v1526, 0
      %v1605 = vsel %vm1191, %v1527, 0
      %v1608 = vsel %vm1191, %v1528, 0
      %v1611 = vsel %vm1191, %v1529, 0
      %v1614 = vsel %vm1191, %v1530, 0
      %v1617 = vsel %vm1191, %v1531, 0
      %v1620 = vsel %vm1191, %v1532, 0
      %v1623 = vsel %vm1191, %v1533, 0
      %v1626 = vsel %vm1191, %v1534, 0
      %v1629 = vsel %vm1191, %v1535, 0
      %v1632 = vsel %vm1191, %v1536, 0
      %v1635 = vsel %vm1191, %v1537, 0
      %v1638 = vsel %vm1191, %v1538, 0
      %v1641 = vsel %vm1191, %v1539, 0
      %v1644 = vsel %vm1191, %v1540, 0
      %v1647 = vsel %vm1191, %v1541, 0
      %v1650 = vsel %vm1191, %v1542, 0
      %v1653 = vsel %vm1191, %v1543, 0
      %v1656 = vsel %vm1191, %v1544, 0
      %1658 = vmatprep.subr.mxu0 0.0
      %1659 = vmatpush1.msra.mxu0 %v1546
      %1660 = vmatprep.subr.mxu0 0.0
      %1661 = vmatpush1.msra.mxu0 %v1547
      %1662 = vmatprep.subr.mxu0 0.0
      %1663 = vmatpush1.msra.mxu0 %v1548
      %1664 = vmatprep.subr.mxu0 0.0
      %1665 = vmatpush1.msra.mxu0 %v1549
      %1666 = vmatprep.subr.mxu0 0.0
      %1667 = vmatpush1.msra.mxu0 %v1550
      %1668 = vmatprep.subr.mxu0 0.0
      %1669 = vmatpush1.msra.mxu0 %v1551
      %1670 = vmatprep.subr.mxu0 0.0
      %1671 = vmatpush1.msra.mxu0 %v1552
      %1672 = vmatprep.subr.mxu0 0.0
      %1673 = vmatpush1.msra.mxu0 %v1553
      %1674 = vmatprep.subr.mxu0 0.0
      %1675 = vmatpush1.msra.mxu0 0.0
      %1676 = vmatprep.subr.mxu0 0.0
      %1677 = vmatpush1.msra.mxu0 0.0
      %1678 = vmatprep.subr.mxu0 0.0
      %1679 = vmatpush1.msra.mxu0 0.0
      %1680 = vmatprep.subr.mxu0 0.0
      %1681 = vmatpush1.msra.mxu0 0.0
      %1682 = vmatprep.subr.mxu0 0.0
      %1683 = vmatpush1.msra.mxu0 0.0
      %1684 = vmatprep.subr.mxu0 0.0
      %1685 = vmatpush1.msra.mxu0 0.0
      %1686 = vmatprep.subr.mxu0 0.0
      %1687 = vmatpush1.msra.mxu0 0.0
      %1688 = vmatprep.subr.mxu0 0.0
      %1689 = vmatpush1.msra.mxu0 0.0
      %1690 = vmatprep.subr.mxu0 0.0
      %1691 = vmatpush1.msra.mxu0 0.0
      %1692 = vmatprep.subr.mxu0 0.0
      %1693 = vmatpush1.msra.mxu0 0.0
      %1694 = vmatprep.subr.mxu0 0.0
      %1695 = vmatpush1.msra.mxu0 0.0
      %1696 = vmatprep.subr.mxu0 0.0
      %1697 = vmatpush1.msra.mxu0 0.0
      %1698 = vmatprep.subr.mxu0 0.0
      %1699 = vmatpush1.msra.mxu0 0.0
      %1700 = vmatprep.subr.mxu0 0.0
      %1701 = vmatpush1.msra.mxu0 0.0
      %1702 = vmatprep.subr.mxu0 0.0
      %1703 = vmatpush1.msra.mxu0 0.0
      %1704 = vmatprep.subr.mxu0 0.0
      %1705 = vmatpush1.msra.mxu0 0.0
      %1706 = vmatprep.subr.mxu0 0.0
      %1707 = vmatpush1.msra.mxu0 0.0
      %1708 = vmatprep.subr.mxu0 0.0
      %1709 = vmatpush1.msra.mxu0 0.0
      %1710 = vmatprep.subr.mxu0 0.0
      %1711 = vmatpush1.msra.mxu0 0.0
      %1712 = vmatprep.subr.mxu0 0.0
      %1713 = vmatpush1.msra.mxu0 0.0
      %1714 = vmatprep.subr.mxu0 0.0
      %1715 = vmatpush1.msra.mxu0 0.0
      %1716 = vmatprep.subr.mxu0 0.0
      %1717 = vmatpush1.msra.mxu0 0.0
      %1718 = vmatprep.subr.mxu0 0.0
      %1719 = vmatpush1.msra.mxu0 0.0
      %1720 = vmatprep.subr.mxu0 0.0
      %1721 = vmatpush1.msra.mxu0 0.0
      %1722 = vmatprep.mubr.f32.mxu0 0.0
      %1723 = vmatmul.mubr.f32.gmra.mrb[0].mxu0 %v1563
      %v1724 = vpop.f32.mrb[0].mxu0
      %v1725 = vadd.f32 %v1560, %v1724
      %v1726 = vpop.f32.mrb[0].mxu0
      %1727 = vmatprep.mubr.f32.mxu0 0.0
      %1728 = vmatmul.mubr.f32.gmra.mrb[0].mxu0 %v1566
      %v1729 = vpop.f32.mrb[0].mxu0
      %v1730 = vadd.f32 %v1560, %v1729
      %v1731 = vpop.f32.mrb[0].mxu0
      %1732 = vmatprep.mubr.f32.mxu0 0.0
      %1733 = vmatmul.mubr.f32.gmra.mrb[0].mxu0 %v1569
      %v1734 = vpop.f32.mrb[0].mxu0
      %v1735 = vadd.f32 %v1560, %v1734
      %v1736 = vpop.f32.mrb[0].mxu0
      %1737 = vmatprep.mubr.f32.mxu0 0.0
      %1738 = vmatmul.mubr.f32.gmra.mrb[0].mxu0 %v1572
      %v1739 = vpop.f32.mrb[0].mxu0
      %v1740 = vadd.f32 %v1560, %v1739
      %v1741 = vpop.f32.mrb[0].mxu0
      %1742 = vmatprep.mubr.f32.mxu0 0.0
      %1743 = vmatmul.mubr.f32.gmra.mrb[0].mxu0 %v1575
      %v1744 = vpop.f32.mrb[0].mxu0
      %v1745 = vadd.f32 %v1560, %v1744
      %v1746 = vpop.f32.mrb[0].mxu0
      %1747 = vmatprep.mubr.f32.mxu0 0.0
      %1748 = vmatmul.mubr.f32.gmra.mrb[0].mxu0 %v1578
      %v1749 = vpop.f32.mrb[0].mxu0
      %v1750 = vadd.f32 %v1560, %v1749
      %v1751 = vpop.f32.mrb[0].mxu0
      %1752 = vmatprep.mubr.f32.mxu0 0.0
      %1753 = vmatmul.mubr.f32.gmra.mrb[0].mxu0 %v1581
      %v1754 = vpop.f32.mrb[0].mxu0
      %v1755 = vadd.f32 %v1560, %v1754
      %v1756 = vpop.f32.mrb[0].mxu0
      %1757 = vmatprep.mubr.f32.mxu0 0.0
      %1758 = vmatmul.mubr.f32.gmra.mrb[0].mxu0 %v1584
      %v1759 = vpop.f32.mrb[0].mxu0
      %v1760 = vadd.f32 %v1560, %v1759
      %v1761 = vpop.f32.mrb[0].mxu0
      %1762 = vmatprep.mubr.f32.mxu0 0.0
      %1763 = vmatmul.mubr.f32.gmra.mrb[0].mxu0 %v1587
      %v1764 = vpop.f32.mrb[0].mxu0
      %v1765 = vadd.f32 %v1560, %v1764
      %v1766 = vpop.f32.mrb[0].mxu0
      %1767 = vmatprep.mubr.f32.mxu0 0.0
      %1768 = vmatmul.mubr.f32.gmra.mrb[0].mxu0 %v1590
      %v1769 = vpop.f32.mrb[0].mxu0
      %v1770 = vadd.f32 %v1560, %v1769
      %v1771 = vpop.f32.mrb[0].mxu0
      %1772 = vmatprep.mubr.f32.mxu0 0.0
      %1773 = vmatmul.mubr.f32.gmra.mrb[0].mxu0 %v1593
      %v1774 = vpop.f32.mrb[0].mxu0
      %v1775 = vadd.f32 %v1560, %v1774
      %v1776 = vpop.f32.mrb[0].mxu0
      %1777 = vmatprep.mubr.f32.mxu0 0.0
      %1778 = vmatmul.mubr.f32.gmra.mrb[0].mxu0 %v1596
      %v1779 = vpop.f32.mrb[0].mxu0
      %v1780 = vadd.f32 %v1560, %v1779
      %v1781 = vpop.f32.mrb[0].mxu0
      %1782 = vmatprep.mubr.f32.mxu0 0.0
      %1783 = vmatmul.mubr.f32.gmra.mrb[0].mxu0 %v1599
      %v1784 = vpop.f32.mrb[0].mxu0
      %v1785 = vadd.f32 %v1560, %v1784
      %v1786 = vpop.f32.mrb[0].mxu0
      %1787 = vmatprep.mubr.f32.mxu0 0.0
      %1788 = vmatmul.mubr.f32.gmra.mrb[0].mxu0 %v1602
      %v1789 = vpop.f32.mrb[0].mxu0
      %v1790 = vadd.f32 %v1560, %v1789
      %v1791 = vpop.f32.mrb[0].mxu0
      %1792 = vmatprep.mubr.f32.mxu0 0.0
      %1793 = vmatmul.mubr.f32.gmra.mrb[0].mxu0 %v1605
      %v1794 = vpop.f32.mrb[0].mxu0
      %v1795 = vadd.f32 %v1560, %v1794
      %v1796 = vpop.f32.mrb[0].mxu0
      %1797 = vmatprep.mubr.f32.mxu0 0.0
      %1798 = vmatmul.mubr.f32.gmra.mrb[0].mxu0 %v1608
      %v1799 = vpop.f32.mrb[0].mxu0
      %v1800 = vadd.f32 %v1560, %v1799
      %v1801 = vpop.f32.mrb[0].mxu0
      %1802 = vmatprep.mubr.f32.mxu0 0.0
      %1803 = vmatmul.mubr.f32.gmra.mrb[0].mxu0 %v1611
      %v1804 = vpop.f32.mrb[0].mxu0
      %v1805 = vadd.f32 %v1560, %v1804
      %v1806 = vpop.f32.mrb[0].mxu0
      %1807 = vmatprep.mubr.f32.mxu0 0.0
      %1808 = vmatmul.mubr.f32.gmra.mrb[0].mxu0 %v1614
      %v1809 = vpop.f32.mrb[0].mxu0
      %v1810 = vadd.f32 %v1560, %v1809
      %v1811 = vpop.f32.mrb[0].mxu0
      %1812 = vmatprep.mubr.f32.mxu0 0.0
      %1813 = vmatmul.mubr.f32.gmra.mrb[0].mxu0 %v1617
      %v1814 = vpop.f32.mrb[0].mxu0
      %v1815 = vadd.f32 %v1560, %v1814
      %v1816 = vpop.f32.mrb[0].mxu0
      %1817 = vmatprep.mubr.f32.mxu0 0.0
      %1818 = vmatmul.mubr.f32.gmra.mrb[0].mxu0 %v1620
      %v1819 = vpop.f32.mrb[0].mxu0
      %v1820 = vadd.f32 %v1560, %v1819
      %v1821 = vpop.f32.mrb[0].mxu0
      %1822 = vmatprep.mubr.f32.mxu0 0.0
      %1823 = vmatmul.mubr.f32.gmra.mrb[0].mxu0 %v1623
      %v1824 = vpop.f32.mrb[0].mxu0
      %v1825 = vadd.f32 %v1560, %v1824
      %v1826 = vpop.f32.mrb[0].mxu0
      %1827 = vmatprep.mubr.f32.mxu0 0.0
      %1828 = vmatmul.mubr.f32.gmra.mrb[0].mxu0 %v1626
      %v1829 = vpop.f32.mrb[0].mxu0
      %v1830 = vadd.f32 %v1560, %v1829
      %v1831 = vpop.f32.mrb[0].mxu0
      %1832 = vmatprep.mubr.f32.mxu0 0.0
      %1833 = vmatmul.mubr.f32.gmra.mrb[0].mxu0 %v1629
      %v1834 = vpop.f32.mrb[0].mxu0
      %v1835 = vadd.f32 %v1560, %v1834
      %v1836 = vpop.f32.mrb[0].mxu0
      %1837 = vmatprep.mubr.f32.mxu0 0.0
      %1838 = vmatmul.mubr.f32.gmra.mrb[0].mxu0 %v1632
      %v1839 = vpop.f32.mrb[0].mxu0
      %v1840 = vadd.f32 %v1560, %v1839
      %v1841 = vpop.f32.mrb[0].mxu0
      %1842 = vmatprep.mubr.f32.mxu0 0.0
      %1843 = vmatmul.mubr.f32.gmra.mrb[0].mxu0 %v1635
      %v1844 = vpop.f32.mrb[0].mxu0
      %v1845 = vadd.f32 %v1560, %v1844
      %v1846 = vpop.f32.mrb[0].mxu0
      %1847 = vmatprep.mubr.f32.mxu0 0.0
      %1848 = vmatmul.mubr.f32.gmra.mrb[0].mxu0 %v1638
      %v1849 = vpop.f32.mrb[0].mxu0
      %v1850 = vadd.f32 %v1560, %v1849
      %v1851 = vpop.f32.mrb[0].mxu0
      %1852 = vmatprep.mubr.f32.mxu0 0.0
      %1853 = vmatmul.mubr.f32.gmra.mrb[0].mxu0 %v1641
      %v1854 = vpop.f32.mrb[0].mxu0
      %v1855 = vadd.f32 %v1560, %v1854
      %v1856 = vpop.f32.mrb[0].mxu0
      %1857 = vmatprep.mubr.f32.mxu0 0.0
      %1858 = vmatmul.mubr.f32.gmra.mrb[0].mxu0 %v1644
      %v1859 = vpop.f32.mrb[0].mxu0
      %v1860 = vadd.f32 %v1560, %v1859
      %v1861 = vpop.f32.mrb[0].mxu0
      %1862 = vmatprep.mubr.f32.mxu0 0.0
      %1863 = vmatmul.mubr.f32.gmra.mrb[0].mxu0 %v1647
      %v1864 = vpop.f32.mrb[0].mxu0
      %v1865 = vadd.f32 %v1560, %v1864
      %v1866 = vpop.f32.mrb[0].mxu0
      %1867 = vmatprep.mubr.f32.mxu0 0.0
      %1868 = vmatmul.mubr.f32.gmra.mrb[0].mxu0 %v1650
      %v1869 = vpop.f32.mrb[0].mxu0
      %v1870 = vadd.f32 %v1560, %v1869
      %v1871 = vpop.f32.mrb[0].mxu0
      %1872 = vmatprep.mubr.f32.mxu0 0.0
      %1873 = vmatmul.mubr.f32.gmra.mrb[0].mxu0 %v1653
      %v1874 = vpop.f32.mrb[0].mxu0
      %v1875 = vadd.f32 %v1560, %v1874
      %v1876 = vpop.f32.mrb[0].mxu0
      %1877 = vmatprep.mubr.f32.mxu0 0.0
      %1878 = vmatmul.mubr.f32.gmra.mrb[0].mxu0 %v1656
      %v1879 = vpop.f32.mrb[0].mxu0
      %v1880 = vadd.f32 %v1560, %v1879
      %v1881 = vpop.f32.mrb[0].mxu0
      %1882 = vdwg.mxu0
      %v1883 = vmax.f32 %v1725, 0.0
      %v1884 = vmax.f32 %v1730, 0.0
      %v1885 = vmax.f32 %v1735, 0.0
      %v1886 = vmax.f32 %v1740, 0.0
      %v1887 = vmax.f32 %v1745, 0.0
      %v1888 = vmax.f32 %v1750, 0.0
      %v1889 = vmax.f32 %v1755, 0.0
      %v1890 = vmax.f32 %v1760, 0.0
      %v1891 = vmax.f32 %v1765, 0.0
      %v1892 = vmax.f32 %v1770, 0.0
      %v1893 = vmax.f32 %v1775, 0.0
      %v1894 = vmax.f32 %v1780, 0.0
      %v1895 = vmax.f32 %v1785, 0.0
      %v1896 = vmax.f32 %v1790, 0.0
      %v1897 = vmax.f32 %v1795, 0.0
      %v1898 = vmax.f32 %v1800, 0.0
      %v1899 = vmax.f32 %v1805, 0.0
      %v1900 = vmax.f32 %v1810, 0.0
      %v1901 = vmax.f32 %v1815, 0.0
      %v1902 = vmax.f32 %v1820, 0.0
      %v1903 = vmax.f32 %v1825, 0.0
      %v1904 = vmax.f32 %v1830, 0.0
      %v1905 = vmax.f32 %v1835, 0.0
      %v1906 = vmax.f32 %v1840, 0.0
      %v1907 = vmax.f32 %v1845, 0.0
      %v1908 = vmax.f32 %v1850, 0.0
      %v1909 = vmax.f32 %v1855, 0.0
      %v1910 = vmax.f32 %v1860, 0.0
      %v1911 = vmax.f32 %v1865, 0.0
      %v1912 = vmax.f32 %v1870, 0.0
      %v1913 = vmax.f32 %v1875, 0.0
      %v1914 = vmax.f32 %v1880, 0.0
      %v1915 = vld [vmem:[%s5] sm:$0xff]
      %v1916 = vld [vmem:[%s5 + $0x8] sm:$0xff]
      %v1917 = vld [vmem:[%s5 + $0x10] sm:$0xff]
      %v1918 = vld [vmem:[%s5 + $0x18] sm:$0xff]
      %v1919 = vld [vmem:[%s5 + $0x20] sm:$0xff]
      %v1920 = vld [vmem:[%s5 + $0x28] sm:$0xff]
      %v1921 = vld [vmem:[%s5 + $0x30] sm:$0xff]
      %v1922 = vld [vmem:[%s5 + $0x38] sm:$0xff]
      %v1923 = vld [vmem:[%s6] sm:$0x1]
      %v1925 = vlaneseq
      %v1926 = vshrl.u32 %v1925, 7
      %v1927 = vsub.s32 0, %v1926
      %v1928 = vrot.slane %v1923, %v1927
      %v1931 = vsel %vm1191, %v1883, 0
      %v1934 = vsel %vm1191, %v1884, 0
      %v1937 = vsel %vm1191, %v1885, 0
      %v1940 = vsel %vm1191, %v1886, 0
      %v1943 = vsel %vm1191, %v1887, 0
      %v1946 = vsel %vm1191, %v1888, 0
      %v1949 = vsel %vm1191, %v1889, 0
      %v1952 = vsel %vm1191, %v1890, 0
      %v1955 = vsel %vm1191, %v1891, 0
      %v1958 = vsel %vm1191, %v1892, 0
      %v1961 = vsel %vm1191, %v1893, 0
      %v1964 = vsel %vm1191, %v1894, 0
      %v1967 = vsel %vm1191, %v1895, 0
      %v1970 = vsel %vm1191, %v1896, 0
      %v1973 = vsel %vm1191, %v1897, 0
      %v1976 = vsel %vm1191, %v1898, 0
      %v1979 = vsel %vm1191, %v1899, 0
      %v1982 = vsel %vm1191, %v1900, 0
      %v1985 = vsel %vm1191, %v1901, 0
      %v1988 = vsel %vm1191, %v1902, 0
      %v1991 = vsel %vm1191, %v1903, 0
      %v1994 = vsel %vm1191, %v1904, 0
      %v1997 = vsel %vm1191, %v1905, 0
      %v2000 = vsel %vm1191, %v1906, 0
      %v2003 = vsel %vm1191, %v1907, 0
      %v2006 = vsel %vm1191, %v1908, 0
      %v2009 = vsel %vm1191, %v1909, 0
      %v2012 = vsel %vm1191, %v1910, 0
      %v2015 = vsel %vm1191, %v1911, 0
      %v2018 = vsel %vm1191, %v1912, 0
      %v2021 = vsel %vm1191, %v1913, 0
      %v2024 = vsel %vm1191, %v1914, 0
      %2026 = vmatprep.subr.mxu0 0.0
      %2027 = vmatpush1.msra.mxu0 %v1915
      %2028 = vmatprep.subr.mxu0 0.0
      %2029 = vmatpush1.msra.mxu0 %v1916
      %2030 = vmatprep.subr.mxu0 0.0
      %2031 = vmatpush1.msra.mxu0 %v1917
      %2032 = vmatprep.subr.mxu0 0.0
      %2033 = vmatpush1.msra.mxu0 %v1918
      %2034 = vmatprep.subr.mxu0 0.0
      %2035 = vmatpush1.msra.mxu0 %v1919
      %2036 = vmatprep.subr.mxu0 0.0
      %2037 = vmatpush1.msra.mxu0 %v1920
      %2038 = vmatprep.subr.mxu0 0.0
      %2039 = vmatpush1.msra.mxu0 %v1921
      %2040 = vmatprep.subr.mxu0 0.0
      %2041 = vmatpush1.msra.mxu0 %v1922
      %2042 = vmatprep.subr.mxu0 0.0
      %2043 = vmatpush1.msra.mxu0 0.0
      %2044 = vmatprep.subr.mxu0 0.0
      %2045 = vmatpush1.msra.mxu0 0.0
      %2046 = vmatprep.subr.mxu0 0.0
      %2047 = vmatpush1.msra.mxu0 0.0
      %2048 = vmatprep.subr.mxu0 0.0
      %2049 = vmatpush1.msra.mxu0 0.0
      %2050 = vmatprep.subr.mxu0 0.0
      %2051 = vmatpush1.msra.mxu0 0.0
      %2052 = vmatprep.subr.mxu0 0.0
      %2053 = vmatpush1.msra.mxu0 0.0
      %2054 = vmatprep.subr.mxu0 0.0
      %2055 = vmatpush1.msra.mxu0 0.0
      %2056 = vmatprep.subr.mxu0 0.0
      %2057 = vmatpush1.msra.mxu0 0.0
      %2058 = vmatprep.subr.mxu0 0.0
      %2059 = vmatpush1.msra.mxu0 0.0
      %2060 = vmatprep.subr.mxu0 0.0
      %2061 = vmatpush1.msra.mxu0 0.0
      %2062 = vmatprep.subr.mxu0 0.0
      %2063 = vmatpush1.msra.mxu0 0.0
      %2064 = vmatprep.subr.mxu0 0.0
      %2065 = vmatpush1.msra.mxu0 0.0
      %2066 = vmatprep.subr.mxu0 0.0
      %2067 = vmatpush1.msra.mxu0 0.0
      %2068 = vmatprep.subr.mxu0 0.0
      %2069 = vmatpush1.msra.mxu0 0.0
      %2070 = vmatprep.subr.mxu0 0.0
      %2071 = vmatpush1.msra.mxu0 0.0
      %2072 = vmatprep.subr.mxu0 0.0
      %2073 = vmatpush1.msra.mxu0 0.0
      %2074 = vmatprep.subr.mxu0 0.0
      %2075 = vmatpush1.msra.mxu0 0.0
      %2076 = vmatprep.subr.mxu0 0.0
      %2077 = vmatpush1.msra.mxu0 0.0
      %2078 = vmatprep.subr.mxu0 0.0
      %2079 = vmatpush1.msra.mxu0 0.0
      %2080 = vmatprep.subr.mxu0 0.0
      %2081 = vmatpush1.msra.mxu0 0.0
      %2082 = vmatprep.subr.mxu0 0.0
      %2083 = vmatpush1.msra.mxu0 0.0
      %2084 = vmatprep.subr.mxu0 0.0
      %2085 = vmatpush1.msra.mxu0 0.0
      %2086 = vmatprep.subr.mxu0 0.0
      %2087 = vmatpush1.msra.mxu0 0.0
      %2088 = vmatprep.subr.mxu0 0.0
      %2089 = vmatpush1.msra.mxu0 0.0
      %2090 = vmatprep.mubr.f32.mxu0 0.0
      %2091 = vmatmul.mubr.f32.gmra.mrb[0].mxu0 %v1931
      %v2092 = vpop.f32.mrb[0].mxu0
      %v2093 = vadd.f32 %v1928, %v2092
      %v2094 = vpop.f32.mrb[0].mxu0
      %2095 = vmatprep.mubr.f32.mxu0 0.0
      %2096 = vmatmul.mubr.f32.gmra.mrb[0].mxu0 %v1934
      %v2097 = vpop.f32.mrb[0].mxu0
      %v2098 = vadd.f32 %v1928, %v2097
      %v2099 = vpop.f32.mrb[0].mxu0
      %2100 = vmatprep.mubr.f32.mxu0 0.0
      %2101 = vmatmul.mubr.f32.gmra.mrb[0].mxu0 %v1937
      %v2102 = vpop.f32.mrb[0].mxu0
      %v2103 = vadd.f32 %v1928, %v2102
      %v2104 = vpop.f32.mrb[0].mxu0
      %2105 = vmatprep.mubr.f32.mxu0 0.0
      %2106 = vmatmul.mubr.f32.gmra.mrb[0].mxu0 %v1940
      %v2107 = vpop.f32.mrb[0].mxu0
      %v2108 = vadd.f32 %v1928, %v2107
      %v2109 = vpop.f32.mrb[0].mxu0
      %2110 = vmatprep.mubr.f32.mxu0 0.0
      %2111 = vmatmul.mubr.f32.gmra.mrb[0].mxu0 %v1943
      %v2112 = vpop.f32.mrb[0].mxu0
      %v2113 = vadd.f32 %v1928, %v2112
      %v2114 = vpop.f32.mrb[0].mxu0
      %2115 = vmatprep.mubr.f32.mxu0 0.0
      %2116 = vmatmul.mubr.f32.gmra.mrb[0].mxu0 %v1946
      %v2117 = vpop.f32.mrb[0].mxu0
      %v2118 = vadd.f32 %v1928, %v2117
      %v2119 = vpop.f32.mrb[0].mxu0
      %2120 = vmatprep.mubr.f32.mxu0 0.0
      %2121 = vmatmul.mubr.f32.gmra.mrb[0].mxu0 %v1949
      %v2122 = vpop.f32.mrb[0].mxu0
      %v2123 = vadd.f32 %v1928, %v2122
      %v2124 = vpop.f32.mrb[0].mxu0
      %2125 = vmatprep.mubr.f32.mxu0 0.0
      %2126 = vmatmul.mubr.f32.gmra.mrb[0].mxu0 %v1952
      %v2127 = vpop.f32.mrb[0].mxu0
      %v2128 = vadd.f32 %v1928, %v2127
      %v2129 = vpop.f32.mrb[0].mxu0
      %2130 = vmatprep.mubr.f32.mxu0 0.0
      %2131 = vmatmul.mubr.f32.gmra.mrb[0].mxu0 %v1955
      %v2132 = vpop.f32.mrb[0].mxu0
      %v2133 = vadd.f32 %v1928, %v2132
      %v2134 = vpop.f32.mrb[0].mxu0
      %2135 = vmatprep.mubr.f32.mxu0 0.0
      %2136 = vmatmul.mubr.f32.gmra.mrb[0].mxu0 %v1958
      %v2137 = vpop.f32.mrb[0].mxu0
      %v2138 = vadd.f32 %v1928, %v2137
      %v2139 = vpop.f32.mrb[0].mxu0
      %2140 = vmatprep.mubr.f32.mxu0 0.0
      %2141 = vmatmul.mubr.f32.gmra.mrb[0].mxu0 %v1961
      %v2142 = vpop.f32.mrb[0].mxu0
      %v2143 = vadd.f32 %v1928, %v2142
      %v2144 = vpop.f32.mrb[0].mxu0
      %2145 = vmatprep.mubr.f32.mxu0 0.0
      %2146 = vmatmul.mubr.f32.gmra.mrb[0].mxu0 %v1964
      %v2147 = vpop.f32.mrb[0].mxu0
      %v2148 = vadd.f32 %v1928, %v2147
      %v2149 = vpop.f32.mrb[0].mxu0
      %2150 = vmatprep.mubr.f32.mxu0 0.0
      %2151 = vmatmul.mubr.f32.gmra.mrb[0].mxu0 %v1967
      %v2152 = vpop.f32.mrb[0].mxu0
      %v2153 = vadd.f32 %v1928, %v2152
      %v2154 = vpop.f32.mrb[0].mxu0
      %2155 = vmatprep.mubr.f32.mxu0 0.0
      %2156 = vmatmul.mubr.f32.gmra.mrb[0].mxu0 %v1970
      %v2157 = vpop.f32.mrb[0].mxu0
      %v2158 = vadd.f32 %v1928, %v2157
      %v2159 = vpop.f32.mrb[0].mxu0
      %2160 = vmatprep.mubr.f32.mxu0 0.0
      %2161 = vmatmul.mubr.f32.gmra.mrb[0].mxu0 %v1973
      %v2162 = vpop.f32.mrb[0].mxu0
      %v2163 = vadd.f32 %v1928, %v2162
      %v2164 = vpop.f32.mrb[0].mxu0
      %2165 = vmatprep.mubr.f32.mxu0 0.0
      %2166 = vmatmul.mubr.f32.gmra.mrb[0].mxu0 %v1976
      %v2167 = vpop.f32.mrb[0].mxu0
      %v2168 = vadd.f32 %v1928, %v2167
      %v2169 = vpop.f32.mrb[0].mxu0
      %2170 = vmatprep.mubr.f32.mxu0 0.0
      %2171 = vmatmul.mubr.f32.gmra.mrb[0].mxu0 %v1979
      %v2172 = vpop.f32.mrb[0].mxu0
      %v2173 = vadd.f32 %v1928, %v2172
      %v2174 = vpop.f32.mrb[0].mxu0
      %2175 = vmatprep.mubr.f32.mxu0 0.0
      %2176 = vmatmul.mubr.f32.gmra.mrb[0].mxu0 %v1982
      %v2177 = vpop.f32.mrb[0].mxu0
      %v2178 = vadd.f32 %v1928, %v2177
      %v2179 = vpop.f32.mrb[0].mxu0
      %2180 = vmatprep.mubr.f32.mxu0 0.0
      %2181 = vmatmul.mubr.f32.gmra.mrb[0].mxu0 %v1985
      %v2182 = vpop.f32.mrb[0].mxu0
      %v2183 = vadd.f32 %v1928, %v2182
      %v2184 = vpop.f32.mrb[0].mxu0
      %2185 = vmatprep.mubr.f32.mxu0 0.0
      %2186 = vmatmul.mubr.f32.gmra.mrb[0].mxu0 %v1988
      %v2187 = vpop.f32.mrb[0].mxu0
      %v2188 = vadd.f32 %v1928, %v2187
      %v2189 = vpop.f32.mrb[0].mxu0
      %2190 = vmatprep.mubr.f32.mxu0 0.0
      %2191 = vmatmul.mubr.f32.gmra.mrb[0].mxu0 %v1991
      %v2192 = vpop.f32.mrb[0].mxu0
      %v2193 = vadd.f32 %v1928, %v2192
      %v2194 = vpop.f32.mrb[0].mxu0
      %2195 = vmatprep.mubr.f32.mxu0 0.0
      %2196 = vmatmul.mubr.f32.gmra.mrb[0].mxu0 %v1994
      %v2197 = vpop.f32.mrb[0].mxu0
      %v2198 = vadd.f32 %v1928, %v2197
      %v2199 = vpop.f32.mrb[0].mxu0
      %2200 = vmatprep.mubr.f32.mxu0 0.0
      %2201 = vmatmul.mubr.f32.gmra.mrb[0].mxu0 %v1997
      %v2202 = vpop.f32.mrb[0].mxu0
      %v2203 = vadd.f32 %v1928, %v2202
      %v2204 = vpop.f32.mrb[0].mxu0
      %2205 = vmatprep.mubr.f32.mxu0 0.0
      %2206 = vmatmul.mubr.f32.gmra.mrb[0].mxu0 %v2000
      %v2207 = vpop.f32.mrb[0].mxu0
      %v2208 = vadd.f32 %v1928, %v2207
      %v2209 = vpop.f32.mrb[0].mxu0
      %2210 = vmatprep.mubr.f32.mxu0 0.0
      %2211 = vmatmul.mubr.f32.gmra.mrb[0].mxu0 %v2003
      %v2212 = vpop.f32.mrb[0].mxu0
      %v2213 = vadd.f32 %v1928, %v2212
      %v2214 = vpop.f32.mrb[0].mxu0
      %2215 = vmatprep.mubr.f32.mxu0 0.0
      %2216 = vmatmul.mubr.f32.gmra.mrb[0].mxu0 %v2006
      %v2217 = vpop.f32.mrb[0].mxu0
      %v2218 = vadd.f32 %v1928, %v2217
      %v2219 = vpop.f32.mrb[0].mxu0
      %2220 = vmatprep.mubr.f32.mxu0 0.0
      %2221 = vmatmul.mubr.f32.gmra.mrb[0].mxu0 %v2009
      %v2222 = vpop.f32.mrb[0].mxu0
      %v2223 = vadd.f32 %v1928, %v2222
      %v2224 = vpop.f32.mrb[0].mxu0
      %2225 = vmatprep.mubr.f32.mxu0 0.0
      %2226 = vmatmul.mubr.f32.gmra.mrb[0].mxu0 %v2012
      %v2227 = vpop.f32.mrb[0].mxu0
      %v2228 = vadd.f32 %v1928, %v2227
      %v2229 = vpop.f32.mrb[0].mxu0
      %2230 = vmatprep.mubr.f32.mxu0 0.0
      %2231 = vmatmul.mubr.f32.gmra.mrb[0].mxu0 %v2015
      %v2232 = vpop.f32.mrb[0].mxu0
      %v2233 = vadd.f32 %v1928, %v2232
      %v2234 = vpop.f32.mrb[0].mxu0
      %2235 = vmatprep.mubr.f32.mxu0 0.0
      %2236 = vmatmul.mubr.f32.gmra.mrb[0].mxu0 %v2018
      %v2237 = vpop.f32.mrb[0].mxu0
      %v2238 = vadd.f32 %v1928, %v2237
      %v2239 = vpop.f32.mrb[0].mxu0
      %2240 = vmatprep.mubr.f32.mxu0 0.0
      %2241 = vmatmul.mubr.f32.gmra.mrb[0].mxu0 %v2021
      %v2242 = vpop.f32.mrb[0].mxu0
      %v2243 = vadd.f32 %v1928, %v2242
      %v2244 = vpop.f32.mrb[0].mxu0
      %2245 = vmatprep.mubr.f32.mxu0 0.0
      %2246 = vmatmul.mubr.f32.gmra.mrb[0].mxu0 %v2024
      %v2247 = vpop.f32.mrb[0].mxu0
      %v2248 = vadd.f32 %v1928, %v2247
      %v2249 = vpop.f32.mrb[0].mxu0
      %2250 = vdwg.mxu0
      %v2251 = vlaneseq
      %v2252 = vand.u32 %v2251, 127
      %v2253 = vxor.u32 %v2093, 2147483648
      %v2254 = vxor.u32 %v2098, 2147483648
      %v2255 = vxor.u32 %v2103, 2147483648
      %v2256 = vxor.u32 %v2108, 2147483648
      %v2257 = vxor.u32 %v2113, 2147483648
      %v2258 = vxor.u32 %v2118, 2147483648
      %v2259 = vxor.u32 %v2123, 2147483648
      %v2260 = vxor.u32 %v2128, 2147483648
      %v2261 = vxor.u32 %v2133, 2147483648
      %v2262 = vxor.u32 %v2138, 2147483648
      %v2263 = vxor.u32 %v2143, 2147483648
      %v2264 = vxor.u32 %v2148, 2147483648
      %v2265 = vxor.u32 %v2153, 2147483648
      %v2266 = vxor.u32 %v2158, 2147483648
      %v2267 = vxor.u32 %v2163, 2147483648
      %v2268 = vxor.u32 %v2168, 2147483648
      %v2269 = vxor.u32 %v2173, 2147483648
      %v2270 = vxor.u32 %v2178, 2147483648
      %v2271 = vxor.u32 %v2183, 2147483648
      %v2272 = vxor.u32 %v2188, 2147483648
      %v2273 = vxor.u32 %v2193, 2147483648
      %v2274 = vxor.u32 %v2198, 2147483648
      %v2275 = vxor.u32 %v2203, 2147483648
      %v2276 = vxor.u32 %v2208, 2147483648
      %v2277 = vxor.u32 %v2213, 2147483648
      %v2278 = vxor.u32 %v2218, 2147483648
      %v2279 = vxor.u32 %v2223, 2147483648
      %v2280 = vxor.u32 %v2228, 2147483648
      %v2281 = vxor.u32 %v2233, 2147483648
      %v2282 = vxor.u32 %v2238, 2147483648
      %v2283 = vxor.u32 %v2243, 2147483648
      %v2284 = vxor.u32 %v2248, 2147483648
      %v2285 = vmul.f32 %v2253, 1.442695
      %v2286 = vpow.pop %v2285
      %v2287 = vmul.f32 %v2254, 1.442695
      %v2288 = vpow.pop %v2287
      %v2289 = vmul.f32 %v2255, 1.442695
      %v2290 = vpow.pop %v2289
      %v2291 = vmul.f32 %v2256, 1.442695
      %v2292 = vpow.pop %v2291
      %v2293 = vmul.f32 %v2257, 1.442695
      %v2294 = vpow.pop %v2293
      %v2295 = vmul.f32 %v2258, 1.442695
      %v2296 = vpow.pop %v2295
      %v2297 = vmul.f32 %v2259, 1.442695
      %v2298 = vpow.pop %v2297
      %v2299 = vmul.f32 %v2260, 1.442695
      %v2300 = vpow.pop %v2299
      %v2301 = vmul.f32 %v2261, 1.442695
      %v2302 = vpow.pop %v2301
      %v2303 = vmul.f32 %v2262, 1.442695
      %v2304 = vpow.pop %v2303
      %v2305 = vmul.f32 %v2263, 1.442695
      %v2306 = vpow.pop %v2305
      %v2307 = vmul.f32 %v2264, 1.442695
      %v2308 = vpow.pop %v2307
      %v2309 = vmul.f32 %v2265, 1.442695
      %v2310 = vpow.pop %v2309
      %v2311 = vmul.f32 %v2266, 1.442695
      %v2312 = vpow.pop %v2311
      %v2313 = vmul.f32 %v2267, 1.442695
      %v2314 = vpow.pop %v2313
      %v2315 = vmul.f32 %v2268, 1.442695
      %v2316 = vpow.pop %v2315
      %v2317 = vmul.f32 %v2269, 1.442695
      %v2318 = vpow.pop %v2317
      %v2319 = vmul.f32 %v2270, 1.442695
      %v2320 = vpow.pop %v2319
      %v2321 = vmul.f32 %v2271, 1.442695
      %v2322 = vpow.pop %v2321
      %v2323 = vmul.f32 %v2272, 1.442695
      %v2324 = vpow.pop %v2323
      %v2325 = vmul.f32 %v2273, 1.442695
      %v2326 = vpow.pop %v2325
      %v2327 = vmul.f32 %v2274, 1.442695
      %v2328 = vpow.pop %v2327
      %v2329 = vmul.f32 %v2275, 1.442695
      %v2330 = vpow.pop %v2329
      %v2331 = vmul.f32 %v2276, 1.442695
      %v2332 = vpow.pop %v2331
      %v2333 = vmul.f32 %v2277, 1.442695
      %v2334 = vpow.pop %v2333
      %v2335 = vmul.f32 %v2278, 1.442695
      %v2336 = vpow.pop %v2335
      %v2337 = vmul.f32 %v2279, 1.442695
      %v2338 = vpow.pop %v2337
      %v2339 = vmul.f32 %v2280, 1.442695
      %v2340 = vpow.pop %v2339
      %v2341 = vmul.f32 %v2281, 1.442695
      %v2342 = vpow.pop %v2341
      %v2343 = vmul.f32 %v2282, 1.442695
      %v2344 = vpow.pop %v2343
      %v2345 = vmul.f32 %v2283, 1.442695
      %v2346 = vpow.pop %v2345
      %v2347 = vmul.f32 %v2284, 1.442695
      %v2348 = vpow.pop %v2347
      %v2349 = vadd.f32 %v2286, 1.0
      %v2350 = vadd.f32 %v2288, 1.0
      %v2351 = vadd.f32 %v2290, 1.0
      %v2352 = vadd.f32 %v2292, 1.0
      %v2353 = vadd.f32 %v2294, 1.0
      %v2354 = vadd.f32 %v2296, 1.0
      %v2355 = vadd.f32 %v2298, 1.0
      %v2356 = vadd.f32 %v2300, 1.0
      %v2357 = vadd.f32 %v2302, 1.0
      %v2358 = vadd.f32 %v2304, 1.0
      %v2359 = vadd.f32 %v2306, 1.0
      %v2360 = vadd.f32 %v2308, 1.0
      %v2361 = vadd.f32 %v2310, 1.0
      %v2362 = vadd.f32 %v2312, 1.0
      %v2363 = vadd.f32 %v2314, 1.0
      %v2364 = vadd.f32 %v2316, 1.0
      %v2365 = vadd.f32 %v2318, 1.0
      %v2366 = vadd.f32 %v2320, 1.0
      %v2367 = vadd.f32 %v2322, 1.0
      %v2368 = vadd.f32 %v2324, 1.0
      %v2369 = vadd.f32 %v2326, 1.0
      %v2370 = vadd.f32 %v2328, 1.0
      %v2371 = vadd.f32 %v2330, 1.0
      %v2372 = vadd.f32 %v2332, 1.0
      %v2373 = vadd.f32 %v2334, 1.0
      %v2374 = vadd.f32 %v2336, 1.0
      %v2375 = vadd.f32 %v2338, 1.0
      %v2376 = vadd.f32 %v2340, 1.0
      %v2377 = vadd.f32 %v2342, 1.0
      %v2378 = vadd.f32 %v2344, 1.0
      %v2379 = vadd.f32 %v2346, 1.0
      %v2380 = vadd.f32 %v2348, 1.0
      %v2381 = vrcp.pop %v2349
      %v2382 = vmul.f32 1.0, %v2381
      %v2383 = vrcp.pop %v2350
      %v2384 = vmul.f32 1.0, %v2383
      %v2385 = vrcp.pop %v2351
      %v2386 = vmul.f32 1.0, %v2385
      %v2387 = vrcp.pop %v2352
      %v2388 = vmul.f32 1.0, %v2387
      %v2389 = vrcp.pop %v2353
      %v2390 = vmul.f32 1.0, %v2389
      %v2391 = vrcp.pop %v2354
      %v2392 = vmul.f32 1.0, %v2391
      %v2393 = vrcp.pop %v2355
      %v2394 = vmul.f32 1.0, %v2393
      %v2395 = vrcp.pop %v2356
      %v2396 = vmul.f32 1.0, %v2395
      %v2397 = vrcp.pop %v2357
      %v2398 = vmul.f32 1.0, %v2397
      %v2399 = vrcp.pop %v2358
      %v2400 = vmul.f32 1.0, %v2399
      %v2401 = vrcp.pop %v2359
      %v2402 = vmul.f32 1.0, %v2401
      %v2403 = vrcp.pop %v2360
      %v2404 = vmul.f32 1.0, %v2403
      %v2405 = vrcp.pop %v2361
      %v2406 = vmul.f32 1.0, %v2405
      %v2407 = vrcp.pop %v2362
      %v2408 = vmul.f32 1.0, %v2407
      %v2409 = vrcp.pop %v2363
      %v2410 = vmul.f32 1.0, %v2409
      %v2411 = vrcp.pop %v2364
      %v2412 = vmul.f32 1.0, %v2411
      %v2413 = vrcp.pop %v2365
      %v2414 = vmul.f32 1.0, %v2413
      %v2415 = vrcp.pop %v2366
      %v2416 = vmul.f32 1.0, %v2415
      %v2417 = vrcp.pop %v2367
      %v2418 = vmul.f32 1.0, %v2417
      %v2419 = vrcp.pop %v2368
      %v2420 = vmul.f32 1.0, %v2419
      %v2421 = vrcp.pop %v2369
      %v2422 = vmul.f32 1.0, %v2421
      %v2423 = vrcp.pop %v2370
      %v2424 = vmul.f32 1.0, %v2423
      %v2425 = vrcp.pop %v2371
      %v2426 = vmul.f32 1.0, %v2425
      %v2427 = vrcp.pop %v2372
      %v2428 = vmul.f32 1.0, %v2427
      %v2429 = vrcp.pop %v2373
      %v2430 = vmul.f32 1.0, %v2429
      %v2431 = vrcp.pop %v2374
      %v2432 = vmul.f32 1.0, %v2431
      %v2433 = vrcp.pop %v2375
      %v2434 = vmul.f32 1.0, %v2433
      %v2435 = vrcp.pop %v2376
      %v2436 = vmul.f32 1.0, %v2435
      %v2437 = vrcp.pop %v2377
      %v2438 = vmul.f32 1.0, %v2437
      %v2439 = vrcp.pop %v2378
      %v2440 = vmul.f32 1.0, %v2439
      %v2441 = vrcp.pop %v2379
      %v2442 = vmul.f32 1.0, %v2441
      %v2443 = vrcp.pop %v2380
      %v2444 = vmul.f32 1.0, %v2443
      %v2445 = vmul.f32 %v2382, 1.002
      %v2446 = vmul.f32 %v2384, 1.002
      %v2447 = vmul.f32 %v2386, 1.002
      %v2448 = vmul.f32 %v2388, 1.002
      %v2449 = vmul.f32 %v2390, 1.002
      %v2450 = vmul.f32 %v2392, 1.002
      %v2451 = vmul.f32 %v2394, 1.002
      %v2452 = vmul.f32 %v2396, 1.002
      %v2453 = vmul.f32 %v2398, 1.002
      %v2454 = vmul.f32 %v2400, 1.002
      %v2455 = vmul.f32 %v2402, 1.002
      %v2456 = vmul.f32 %v2404, 1.002
      %v2457 = vmul.f32 %v2406, 1.002
      %v2458 = vmul.f32 %v2408, 1.002
      %v2459 = vmul.f32 %v2410, 1.002
      %v2460 = vmul.f32 %v2412, 1.002
      %v2461 = vmul.f32 %v2414, 1.002
      %v2462 = vmul.f32 %v2416, 1.002
      %v2463 = vmul.f32 %v2418, 1.002
      %v2464 = vmul.f32 %v2420, 1.002
      %v2465 = vmul.f32 %v2422, 1.002
      %v2466 = vmul.f32 %v2424, 1.002
      %v2467 = vmul.f32 %v2426, 1.002
      %v2468 = vmul.f32 %v2428, 1.002
      %v2469 = vmul.f32 %v2430, 1.002
      %v2470 = vmul.f32 %v2432, 1.002
      %v2471 = vmul.f32 %v2434, 1.002
      %v2472 = vmul.f32 %v2436, 1.002
      %v2473 = vmul.f32 %v2438, 1.002
      %v2474 = vmul.f32 %v2440, 1.002
      %v2475 = vmul.f32 %v2442, 1.002
      %v2476 = vmul.f32 %v2444, 1.002
      %v2477 = vsub.f32 %v2445, 0.001
      %v2478 = vsub.f32 %v2446, 0.001
      %v2479 = vsub.f32 %v2447, 0.001
      %v2480 = vsub.f32 %v2448, 0.001
      %v2481 = vsub.f32 %v2449, 0.001
      %v2482 = vsub.f32 %v2450, 0.001
      %v2483 = vsub.f32 %v2451, 0.001
      %v2484 = vsub.f32 %v2452, 0.001
      %v2485 = vsub.f32 %v2453, 0.001
      %v2486 = vsub.f32 %v2454, 0.001
      %v2487 = vsub.f32 %v2455, 0.001
      %v2488 = vsub.f32 %v2456, 0.001
      %v2489 = vsub.f32 %v2457, 0.001
      %v2490 = vsub.f32 %v2458, 0.001
      %v2491 = vsub.f32 %v2459, 0.001
      %v2492 = vsub.f32 %v2460, 0.001
      %v2493 = vsub.f32 %v2461, 0.001
      %v2494 = vsub.f32 %v2462, 0.001
      %v2495 = vsub.f32 %v2463, 0.001
      %v2496 = vsub.f32 %v2464, 0.001
      %v2497 = vsub.f32 %v2465, 0.001
      %v2498 = vsub.f32 %v2466, 0.001
      %v2499 = vsub.f32 %v2467, 0.001
      %v2500 = vsub.f32 %v2468, 0.001
      %v2501 = vsub.f32 %v2469, 0.001
      %v2502 = vsub.f32 %v2470, 0.001
      %v2503 = vsub.f32 %v2471, 0.001
      %v2504 = vsub.f32 %v2472, 0.001
      %v2505 = vsub.f32 %v2473, 0.001
      %v2506 = vsub.f32 %v2474, 0.001
      %v2507 = vsub.f32 %v2475, 0.001
      %v2508 = vsub.f32 %v2476, 0.001
      %vm2509 = vcmp.eq.s32.totalorder %v2252, 0
      %v2510 = vsel %vm2509, %v2093, %v2477
      %v2511 = vsel %vm2509, %v2098, %v2478
      %v2512 = vsel %vm2509, %v2103, %v2479
      %v2513 = vsel %vm2509, %v2108, %v2480
      %v2514 = vsel %vm2509, %v2113, %v2481
      %v2515 = vsel %vm2509, %v2118, %v2482
      %v2516 = vsel %vm2509, %v2123, %v2483
      %v2517 = vsel %vm2509, %v2128, %v2484
      %v2518 = vsel %vm2509, %v2133, %v2485
      %v2519 = vsel %vm2509, %v2138, %v2486
      %v2520 = vsel %vm2509, %v2143, %v2487
      %v2521 = vsel %vm2509, %v2148, %v2488
      %v2522 = vsel %vm2509, %v2153, %v2489
      %v2523 = vsel %vm2509, %v2158, %v2490
      %v2524 = vsel %vm2509, %v2163, %v2491
      %v2525 = vsel %vm2509, %v2168, %v2492
      %v2526 = vsel %vm2509, %v2173, %v2493
      %v2527 = vsel %vm2509, %v2178, %v2494
      %v2528 = vsel %vm2509, %v2183, %v2495
      %v2529 = vsel %vm2509, %v2188, %v2496
      %v2530 = vsel %vm2509, %v2193, %v2497
      %v2531 = vsel %vm2509, %v2198, %v2498
      %v2532 = vsel %vm2509, %v2203, %v2499
      %v2533 = vsel %vm2509, %v2208, %v2500
      %v2534 = vsel %vm2509, %v2213, %v2501
      %v2535 = vsel %vm2509, %v2218, %v2502
      %v2536 = vsel %vm2509, %v2223, %v2503
      %v2537 = vsel %vm2509, %v2228, %v2504
      %v2538 = vsel %vm2509, %v2233, %v2505
      %v2539 = vsel %vm2509, %v2238, %v2506
      %v2540 = vsel %vm2509, %v2243, %v2507
      %v2541 = vsel %vm2509, %v2248, %v2508
      %vm2542 = vcmask 31744
      %2543 = vst.msk [vmem:[%s316] sm:$0xff] %vm2542, %v2510
      %2544 = vst.msk [vmem:[%s316 + $0x8] sm:$0xff] %vm2542, %v2511
      %2545 = vst.msk [vmem:[%s316 + $0x10] sm:$0xff] %vm2542, %v2512
      %2546 = vst.msk [vmem:[%s316 + $0x18] sm:$0xff] %vm2542, %v2513
      %2547 = vst.msk [vmem:[%s316 + $0x20] sm:$0xff] %vm2542, %v2514
      %2548 = vst.msk [vmem:[%s316 + $0x28] sm:$0xff] %vm2542, %v2515
      %2549 = vst.msk [vmem:[%s316 + $0x30] sm:$0xff] %vm2542, %v2516
      %2550 = vst.msk [vmem:[%s316 + $0x38] sm:$0xff] %vm2542, %v2517
      %2551 = vst.msk [vmem:[%s316 + $0x40] sm:$0xff] %vm2542, %v2518
      %2552 = vst.msk [vmem:[%s316 + $0x48] sm:$0xff] %vm2542, %v2519
      %2553 = vst.msk [vmem:[%s316 + $0x50] sm:$0xff] %vm2542, %v2520
      %2554 = vst.msk [vmem:[%s316 + $0x58] sm:$0xff] %vm2542, %v2521
      %2555 = vst.msk [vmem:[%s316 + $0x60] sm:$0xff] %vm2542, %v2522
      %2556 = vst.msk [vmem:[%s316 + $0x68] sm:$0xff] %vm2542, %v2523
      %2557 = vst.msk [vmem:[%s316 + $0x70] sm:$0xff] %vm2542, %v2524
      %2558 = vst.msk [vmem:[%s316 + $0x78] sm:$0xff] %vm2542, %v2525
      %2559 = vst.msk [vmem:[%s316 + $0x80] sm:$0xff] %vm2542, %v2526
      %2560 = vst.msk [vmem:[%s316 + $0x88] sm:$0xff] %vm2542, %v2527
      %2561 = vst.msk [vmem:[%s316 + $0x90] sm:$0xff] %vm2542, %v2528
      %2562 = vst.msk [vmem:[%s316 + $0x98] sm:$0xff] %vm2542, %v2529
      %2563 = vst.msk [vmem:[%s316 + $0xa0] sm:$0xff] %vm2542, %v2530
      %2564 = vst.msk [vmem:[%s316 + $0xa8] sm:$0xff] %vm2542, %v2531
      %2565 = vst.msk [vmem:[%s316 + $0xb0] sm:$0xff] %vm2542, %v2532
      %2566 = vst.msk [vmem:[%s316 + $0xb8] sm:$0xff] %vm2542, %v2533
      %2567 = vst.msk [vmem:[%s316 + $0xc0] sm:$0xff] %vm2542, %v2534
      %2568 = vst.msk [vmem:[%s316 + $0xc8] sm:$0xff] %vm2542, %v2535
      %2569 = vst.msk [vmem:[%s316 + $0xd0] sm:$0xff] %vm2542, %v2536
      %2570 = vst.msk [vmem:[%s316 + $0xd8] sm:$0xff] %vm2542, %v2537
      %2571 = vst.msk [vmem:[%s316 + $0xe0] sm:$0xff] %vm2542, %v2538
      %2572 = vst.msk [vmem:[%s316 + $0xe8] sm:$0xff] %vm2542, %v2539
      %2573 = vst.msk [vmem:[%s316 + $0xf0] sm:$0xff] %vm2542, %v2540
      %2574 = vst.msk [vmem:[%s316 + $0xf8] sm:$0xff] %vm2542, %v2541
      %s2575 = smul.u32 32, %s23
      %p2576 = scmp.lt.s32.totalorder %s22, 1
      %s2577 = scalar_select %p2576, %s22, 1
      %p2578 = scmp.lt.s32.totalorder %s2575, 31
      %s2579 = scalar_select %p2578, %s2575, 31
      %s2580 = smul.addr %s2577, 32
      %s2581 = sadd.s32 %s2579, %s2580
      %s2582 = smul.addr %s2581, 8
      %s2583 = scalar_lea.vmem %s7, %s2582
      // Predicated region
      $region49: #{lrm_osg_decoder_forward.1} parent=47 // pred_check
        %p2584 = pneg %p204
      $region50: #{lrm_osg_decoder_forward.1} parent=47 // pred_check_branch
        %2586 = sbr.rel (%p2584) target = $region52
      $region51: #{lrm_osg_decoder_forward.1} parent=47 // pred_region
        %s2587 = smul.u32 32, %s23
      $region52: #{lrm_osg_decoder_forward.1} parent=47 // pred_fallthru
        _
    $region48: #{lrm_osg_decoder_forward.1} parent=5 // pred_fallthru
      _
    %p2588 = scmp.le.s32.totalorder 2, %s13
    // Predicated region
    $region53: #{lrm_osg_decoder_forward.1} parent=5 // pred_check
      %p2589 = pneg %p2588
    $region54: #{lrm_osg_decoder_forward.1} parent=5 // pred_check_branch
      %2591 = sbr.rel (%p2589) target = $region56
    $region55: #{lrm_osg_decoder_forward.1} parent=5 // pred_region
      %s2592 = ssub.s32 %s13, 2
      // Predicated region
      $region57: #{lrm_osg_decoder_forward.1} parent=55 // pred_check
        %p2593 = pneg %p210
      $region58: #{lrm_osg_decoder_forward.1} parent=55 // pred_check_branch
        %2595 = sbr.rel (%p2593) target = $region60
      $region59: #{lrm_osg_decoder_forward.1} parent=55 // pred_region
        %s2596 = smul.u32 32, %s25
        %p2597 = scmp.lt.s32.totalorder %s24, 1
        %s2598 = scalar_select %p2597, %s24, 1
        %p2599 = scmp.lt.s32.totalorder %s2596, 31
        %s2600 = scalar_select %p2599, %s2596, 31
        %s2601 = smul.addr %s2598, 32
        %s2602 = sadd.s32 %s2600, %s2601
        %s2603 = smul.addr %s2602, 8
        %s2604 = scalar_lea.vmem %s7, %s2603
      $region60: #{lrm_osg_decoder_forward.1} parent=55 // pred_fallthru
        _
    $region56: #{lrm_osg_decoder_forward.1} parent=5 // pred_fallthru
      _
  $region6: #{lrm_osg_decoder_forward.1} parent=0 // loop_footer
    %s17 = sadd.s32 1, %s13
  $region7: #{lrm_osg_decoder_forward.1} parent=0 // loop_footer_branch
    %12 = sbr.rel target = $region3
  $region8: #{lrm_osg_decoder_forward.1} parent=0 // loop_exit
    _

</llo_original>
